<compile_context>
chip_gen: v6e
topology: v6e:2x2x1
jax: 0.10.0
libtpu: 0.0.40
codegen_flags: <defaults>
</compile_context>

<pallas_src>
import functools

import jax
import jax.numpy as jnp
from jax.experimental import pallas as pl
from jax.experimental.pallas import tpu as pltpu


# ------------------------------ Pallas kernels -------------------------------

def _down_kernel(patch_ref, w_ref, d_ref):
    """d = ReLU(W_down @ LeakyPatches): (Cout, M) lane-dense, uprelu fused."""
    acc = jnp.dot(w_ref[...], patch_ref[...], preferred_element_type=jnp.float32)
    d_ref[...] = jnp.maximum(acc, 0.0).astype(d_ref.dtype)


def _up_bn_se_kernel(up_patch_ref, up_w_ref, gamma_ref, beta_ref,
                     w1t_ref, w2_ref, selp_ref, selb_ref,
                     xs_ref, xm_ref, acc_ref, *, eps):
    """Phase-decomposed ConvTranspose2d -> BatchNorm -> SE -> +res -> ReLU."""
    n_phase, _, m_d = up_patch_ref.shape
    # 4 dense phase matmuls (no zero-dilated input); each writes an aligned,
    # 128-wide column block of the f32 accumulator.
    for ph in range(n_phase):
        acc_ref[:, ph * m_d:(ph + 1) * m_d] = jnp.dot(
            up_w_ref[ph], up_patch_ref[ph], preferred_element_type=jnp.float32)

    x = acc_ref[...]                                           # (C, M) f32
    # BatchNorm2d, training-mode batch stats, single pass (biased variance).
    mean = jnp.mean(x, axis=1, keepdims=True)
    var = jnp.mean(x * x, axis=1, keepdims=True) - mean * mean
    xm = (x - mean) * jax.lax.rsqrt(var + eps) * gamma_ref[...] + beta_ref[...]
    xm_ref[...] = xm                                           # residual branch (f32)

    # SELayer. Per-(batch, channel) spatial mean via a lane-dense selector
    # matmul (selp columns are 1/(H*W) on the columns of that batch).
    pooled = jnp.dot(xm, selp_ref[...], preferred_element_type=jnp.float32)  # (C, B)
    # Degenerate FCs (C//r == 1 here): VPU broadcast-multiply + reduce; no
    # 1-wide MXU matmuls. Generic in Cr.
    w1t = w1t_ref[...]                                         # (C, Cr)
    w2 = w2_ref[...]                                           # (C, Cr)
    h = jnp.maximum(jnp.sum(w1t[:, :, None] * pooled[:, None, :], axis=0), 0.0)  # (Cr, B)
    y = jax.nn.sigmoid(jnp.sum(w2[:, :, None] * h[None, :, :], axis=1))          # (C, B)
    # x * y + residual (residual == x) then ReLU, i.e. relu(x * (1 + y)).
    scale = 1.0 + jnp.dot(y, selb_ref[...], preferred_element_type=jnp.float32)  # (C, M)
    xs_ref[...] = jnp.maximum(xm * scale, 0.0).astype(xs_ref.dtype)


def _seconv_bn_cat_kernel(patch_ref, w_ref, gamma_ref, beta_ref, res_ref,
                          out_ref, *, eps):
    """out[0:C] = BN(W_se @ patches); out[C:2C] = residual (free concat)."""
    c = w_ref.shape[0]
    xc = jnp.dot(w_ref[...], patch_ref[...], preferred_element_type=jnp.float32)
    mean = jnp.mean(xc, axis=1, keepdims=True)
    var = jnp.mean(xc * xc, axis=1, keepdims=True) - mean * mean
    out_ref[0:c, :] = ((xc - mean) * jax.lax.rsqrt(var + eps)
                       * gamma_ref[...] + beta_ref[...])
    out_ref[c:2 * c, :] = res_ref[...]


# ------------------------------ pallas_call wrappers --------------------------

def _full_spec(shape):
    nd = len(shape)
    return pl.BlockSpec(tuple(shape), lambda i, _nd=nd: (0,) * _nd)


def down_conv(patch, w):
    k, m = patch.shape
    cout = w.shape[0]
    return pl.pallas_call(
        _down_kernel,
        out_shape=jax.ShapeDtypeStruct((cout, m), jnp.bfloat16),
        grid=(1,),
        in_specs=[_full_spec(patch.shape), _full_spec(w.shape)],
        out_specs=_full_spec((cout, m)),
    )(patch, w)


def up_bn_se(up_patch, up_w, gamma, beta, w1t, w2, sel_pool, sel_bcast, eps=1e-5):
    n_ph, _, m_d = up_patch.shape
    c = up_w.shape[1]
    m = n_ph * m_d
    return pl.pallas_call(
        functools.partial(_up_bn_se_kernel, eps=eps),
        out_shape=(jax.ShapeDtypeStruct((c, m), jnp.bfloat16),   # xs -> se_conv
                   jax.ShapeDtypeStruct((c, m), jnp.float32)),   # xm -> residual
        grid=(1,),
        in_specs=[_full_spec(up_patch.shape), _full_spec(up_w.shape),
                  _full_spec(gamma.shape), _full_spec(beta.shape),
                  _full_spec(w1t.shape), _full_spec(w2.shape),
                  _full_spec(sel_pool.shape), _full_spec(sel_bcast.shape)],
        out_specs=(_full_spec((c, m)), _full_spec((c, m))),
        scratch_shapes=[pltpu.VMEM((c, m), jnp.float32)],
    )(up_patch, up_w, gamma, beta, w1t, w2, sel_pool, sel_bcast)


def seconv_bn_cat(patch, w, gamma, beta, residual, eps=1e-5):
    _, m = patch.shape
    c = w.shape[0]
    return pl.pallas_call(
        functools.partial(_seconv_bn_cat_kernel, eps=eps),
        out_shape=jax.ShapeDtypeStruct((2 * c, m), jnp.float32),
        grid=(1,),
        in_specs=[_full_spec(patch.shape), _full_spec(w.shape),
                  _full_spec(gamma.shape), _full_spec(beta.shape),
                  _full_spec(residual.shape)],
        out_specs=_full_spec((2 * c, m)),
    )(patch, w, gamma, beta, residual)


# ------------------------------ SEBlock ---------------------------------------

class SEBlockPallas:
    """SEBlock(outer_nc, inner_nc, innermost=True, norm_layer=BatchNorm2d)."""

    def __init__(self, outer_nc, inner_nc, input_nc=None, reduction=16, key=None):
        if input_nc is None:
            input_nc = outer_nc
        assert outer_nc >= 16, "SE path requires outer_nc >= 16 (self.k == False)"
        self.outer_nc, self.inner_nc, self.input_nc = outer_nc, inner_nc, input_nc
        ks = jax.random.split(key, 5)
        s = 0.1
        # norm_layer == BatchNorm2d => use_bias == False for every conv.
        self.w_down = jax.random.normal(ks[0], (inner_nc, input_nc, 4, 4), jnp.float32) * s
        self.w_up = jax.random.normal(ks[1], (inner_nc, outer_nc, 4, 4), jnp.float32) * s
        self.w_se_conv = jax.random.normal(ks[2], (outer_nc, outer_nc, 3, 3), jnp.float32) * s
        cr = outer_nc // reduction                    # == 1 for outer_nc=16 (as in PyTorch)
        self.w_fc1 = jax.random.normal(ks[3], (cr, outer_nc), jnp.float32) * s   # Linear(C, C//r)
        self.w_fc2 = jax.random.normal(ks[4], (outer_nc, cr), jnp.float32) * s   # Linear(C//r, C)
        self.upnorm_gamma = jnp.ones((outer_nc, 1), jnp.float32)
        self.upnorm_beta = jnp.zeros((outer_nc, 1), jnp.float32)
        self.senorm_gamma = jnp.ones((outer_nc, 1), jnp.float32)
        self.senorm_beta = jnp.zeros((outer_nc, 1), jnp.float32)

    def __call__(self, x):
        cin, inner, c = self.input_nc, self.inner_nc, self.outer_nc
        b, cin_x, h, w = x.shape
        assert cin_x == cin
        ho, wo = h // 2, w // 2
        m_d = b * ho * wo                    # columns at half resolution
        m = b * h * w                        # columns at full resolution

        # ---- stage 1: LeakyReLU(0.2) -> Conv2d(cin,inner,4,2,1) -> ReLU ------
        # Activation in f32 (v5e-safe), matmul operands bf16, f32 accumulate.
        x_c = jnp.transpose(x, (1, 0, 2, 3))                          # (Cin,B,H,W)
        x_c = jnp.where(x_c > 0, x_c, 0.2 * x_c).astype(jnp.bfloat16)
        xp = jnp.pad(x_c, ((0, 0), (0, 0), (1, 1), (1, 1)))
        d_taps = [xp[:, :, ki:ki + 2 * ho:2, kj:kj + 2 * wo:2]
                  for ki in range(4) for kj in range(4)]              # (Cin,B,Ho,Wo)
        d_patch = jnp.stack(d_taps, axis=1).reshape(cin * 16, m_d)    # (K, M) lane-dense
        w_d = self.w_down.reshape(inner, cin * 16).astype(jnp.bfloat16)
        d = down_conv(d_patch, w_d)                                   # (inner, M_d) bf16

        # ---- stage 2: ConvTranspose2d(inner,c,4,2,1) -> BN -> SE -> +res -> ReLU
        # Stride-phase decomposition: output parity (ry,rx) uses 2x2 kernel taps.
        d_sp = d.reshape(inner, b, ho, wo)
        d_pad = jnp.pad(d_sp, ((0, 0), (0, 0), (1, 1), (1, 1)))
        KI = ((1, 3), (0, 2))      # original kernel tap per (output parity, t)
        SH = ((1, 0), (2, 1))      # matching slice offset into d_pad
        patches, weights = [], []
        for ry in range(2):
            for rx in range(2):
                taps, wts = [], []
                for th in range(2):
                    for tw in range(2):
                        taps.append(d_pad[:, :, SH[ry][th]:SH[ry][th] + ho,
                                               SH[rx][tw]:SH[rx][tw] + wo])
                        wts.append(self.w_up[:, :, KI[ry][th], KI[rx][tw]])  # (inner, C)
                patches.append(jnp.stack(taps, axis=1).reshape(inner * 4, m_d))
                weights.append(jnp.stack(wts, axis=1).transpose(2, 0, 1)
                               .reshape(c, inner * 4))
        up_patch = jnp.stack(patches, axis=0)                         # (4, 4*inner, M_d) bf16
        up_w = jnp.stack(weights, axis=0).astype(jnp.bfloat16)        # (4, C, 4*inner)

        # Per-column batch selector; kernel-2 columns are (phase, b, a, bb) ordered.
        col_b = (jnp.arange(4 * m_d) % m_d) // (ho * wo)
        onehot = (col_b[:, None] == jnp.arange(b)[None, :]).astype(jnp.float32)
        sel_pool = onehot * (1.0 / (h * w))                           # (M, B) spatial mean
        sel_bcast = onehot.T                                          # (B, M) broadcast back

        w1t = self.w_fc1.T                                            # (C, Cr)
        xs_pm, xm_pm = up_bn_se(up_patch, up_w, self.upnorm_gamma, self.upnorm_beta,
                                w1t, self.w_fc2, sel_pool, sel_bcast)

        # De-interleave phase-ordered columns back to (b, y, x) spatial order.
        def _spatial(z):
            z = z.reshape(c, 2, 2, b, ho, wo)          # (c, ry, rx, b, a, bb)
            z = z.transpose(0, 3, 4, 1, 5, 2)          # (c, b, a, ry, bb, rx)
            return z.reshape(c, b, h, w)
        xs_sp = _spatial(xs_pm)                        # bf16, feeds se_conv taps
        residual = _spatial(xm_pm).reshape(c, m)       # f32, columns (b, y, x)

        # ---- stage 3: Conv2d(c,c,3,1,1) -> BN, residual concatenated in-kernel
        xs_pad = jnp.pad(xs_sp, ((0, 0), (0, 0), (1, 1), (1, 1)))
        s_taps = [xs_pad[:, :, di:di + h, dj:dj + w]
                  for di in range(3) for dj in range(3)]
        se_patch = jnp.stack(s_taps, axis=1).reshape(c * 9, m)        # bf16
        w_se = self.w_se_conv.reshape(c, c * 9).astype(jnp.bfloat16)
        out_flat = seconv_bn_cat(se_patch, w_se, self.senorm_gamma,
                                 self.senorm_beta, residual)          # (2C, M) f32
        # torch.cat([x, residual], 1): channels [0:C]=se_norm out, [C:2C]=residual.
        return out_flat.reshape(2 * c, b, h, w).transpose(1, 0, 2, 3)


if __name__ == "__main__":
    key = jax.random.PRNGKey(0)
    kx, kp = jax.random.split(key)
    B, C, H, W = 2, 16, 16, 16                    # input_nc = outer_nc = 16
    x = jax.random.normal(kx, (B, C, H, W), jnp.float32)

    block = SEBlockPallas(outer_nc=16, inner_nc=32, key=kp)
    out = jax.jit(block.__call__)(x)
    out = jax.block_until_ready(out)
    assert out.shape == (B, 2 * C, H, W), out.shape
    assert jnp.all(jnp.isfinite(out))
    print("KERNEL_OK")
</pallas_src>

<mosaic_0001>
module attributes {stable_mosaic.version = 11 : i64} {
  func.func @_down_kernel(%arg0: i32, %arg1: memref<256x128xbf16, #tpu.memory_space<vmem>>, %arg2: memref<32x256xbf16, #tpu.memory_space<vmem>>, %arg3: memref<32x128xbf16, #tpu.memory_space<vmem>>) attributes {dimension_semantics = [#tpu.dimension_semantics<arbitrary>], iteration_bounds = array<i64: 1>, scalar_prefetch = 0 : i64, scratch_operands = 0 : i64, tpu.core_type = #tpu.core_type<tc>, window_params = [{pipeline_mode = #tpu.pipeline_mode<synchronous>, transform_indices = @transform_0, window_bounds = array<i64: 256, 128>}, {pipeline_mode = #tpu.pipeline_mode<synchronous>, transform_indices = @transform_1, window_bounds = array<i64: 32, 256>}, {pipeline_mode = #tpu.pipeline_mode<synchronous>, transform_indices = @transform_2, window_bounds = array<i64: 32, 128>}]} {
    %c0 = arith.constant 0 : index
    %c0_0 = arith.constant 0 : index
    %0 = vector.load %arg2[%c0, %c0_0] : memref<32x256xbf16, #tpu.memory_space<vmem>>, vector<32x256xbf16>
    %c0_1 = arith.constant 0 : index
    %c0_2 = arith.constant 0 : index
    %1 = vector.load %arg1[%c0_1, %c0_2] : memref<256x128xbf16, #tpu.memory_space<vmem>>, vector<256x128xbf16>
    %cst = arith.constant dense<0.000000e+00> : vector<32x128xf32>
    %2 = tpu.matmul %0, %1, %cst {dimension_numbers = #tpu.dot_dimension_numbers<[1], [0], [0], [1], [0, 0, 1, 1], [], []>} : vector<32x256xbf16>, vector<256x128xbf16>, vector<32x128xf32> -> vector<32x128xf32>
    %cst_3 = arith.constant 0.000000e+00 : f32
    %3 = vector.broadcast %cst_3 : f32 to vector<32x128xf32>
    %4 = arith.maximumf %2, %3 : vector<32x128xf32>
    %5 = arith.truncf %4 : vector<32x128xf32> to vector<32x128xbf16>
    %c0_4 = arith.constant 0 : index
    %c0_5 = arith.constant 0 : index
    %6 = vector.load %arg3[%c0_4, %c0_5] : memref<32x128xbf16, #tpu.memory_space<vmem>>, vector<32x128xbf16>
    tpu.vector_store %arg3[%c0_4, %c0_5], %5 {strides = array<i32>} : memref<32x128xbf16, #tpu.memory_space<vmem>>, vector<32x128xbf16>,
    return
  }
  func.func @transform_0(%arg0: i32) -> (i32, i32) {
    %c0_i32 = arith.constant 0 : i32
    %c0_i32_0 = arith.constant 0 : i32
    %c0_i32_1 = arith.constant 0 : i32
    return %c0_i32, %c0_i32_0 : i32, i32
  }
  func.func @transform_1(%arg0: i32) -> (i32, i32) {
    %c0_i32 = arith.constant 0 : i32
    %c0_i32_0 = arith.constant 0 : i32
    %c0_i32_1 = arith.constant 0 : i32
    return %c0_i32, %c0_i32_0 : i32, i32
  }
  func.func @transform_2(%arg0: i32) -> (i32, i32) {
    %c0_i32 = arith.constant 0 : i32
    %c0_i32_0 = arith.constant 0 : i32
    %c0_i32_1 = arith.constant 0 : i32
    return %c0_i32, %c0_i32_0 : i32, i32
  }
}

module attributes {stable_mosaic.version = 11 : i64} {
  func.func @_up_bn_se_kernel(%arg0: i32, %arg1: memref<4x128x128xbf16, #tpu.memory_space<vmem>>, %arg2: memref<4x16x128xbf16, #tpu.memory_space<vmem>>, %arg3: memref<16x1xf32, #tpu.memory_space<vmem>>, %arg4: memref<16x1xf32, #tpu.memory_space<vmem>>, %arg5: memref<16x1xf32, #tpu.memory_space<vmem>>, %arg6: memref<16x1xf32, #tpu.memory_space<vmem>>, %arg7: memref<512x2xf32, #tpu.memory_space<vmem>>, %arg8: memref<2x512xf32, #tpu.memory_space<vmem>>, %arg9: memref<16x512xbf16, #tpu.memory_space<vmem>>, %arg10: memref<16x512xf32, #tpu.memory_space<vmem>>, %arg11: memref<16x512xf32, #tpu.memory_space<vmem>>) attributes {dimension_semantics = [#tpu.dimension_semantics<arbitrary>], iteration_bounds = array<i64: 1>, scalar_prefetch = 0 : i64, scratch_operands = 1 : i64, tpu.core_type = #tpu.core_type<tc>, window_params = [{pipeline_mode = #tpu.pipeline_mode<synchronous>, transform_indices = @transform_0, window_bounds = array<i64: 4, 128, 128>}, {pipeline_mode = #tpu.pipeline_mode<synchronous>, transform_indices = @transform_1, window_bounds = array<i64: 4, 16, 128>}, {pipeline_mode = #tpu.pipeline_mode<synchronous>, transform_indices = @transform_2, window_bounds = array<i64: 16, 1>}, {pipeline_mode = #tpu.pipeline_mode<synchronous>, transform_indices = @transform_3, window_bounds = array<i64: 16, 1>}, {pipeline_mode = #tpu.pipeline_mode<synchronous>, transform_indices = @transform_4, window_bounds = array<i64: 16, 1>}, {pipeline_mode = #tpu.pipeline_mode<synchronous>, transform_indices = @transform_5, window_bounds = array<i64: 16, 1>}, {pipeline_mode = #tpu.pipeline_mode<synchronous>, transform_indices = @transform_6, window_bounds = array<i64: 512, 2>}, {pipeline_mode = #tpu.pipeline_mode<synchronous>, transform_indices = @transform_7, window_bounds = array<i64: 2, 512>}, {pipeline_mode = #tpu.pipeline_mode<synchronous>, transform_indices = @transform_8, window_bounds = array<i64: 16, 512>}, {pipeline_mode = #tpu.pipeline_mode<synchronous>, transform_indices = @transform_9, window_bounds = array<i64: 16, 512>}]} {
    %c0 = arith.constant 0 : index
    %c0_0 = arith.constant 0 : index
    %c0_1 = arith.constant 0 : index
    %0 = vector.load %arg2[%c0, %c0_0, %c0_1] : memref<4x16x128xbf16, #tpu.memory_space<vmem>>, vector<1x16x128xbf16>
    %1 = vector.shape_cast %0 : vector<1x16x128xbf16> to vector<16x128xbf16>
    %c0_2 = arith.constant 0 : index
    %c0_3 = arith.constant 0 : index
    %c0_4 = arith.constant 0 : index
    %2 = vector.load %arg1[%c0_2, %c0_3, %c0_4] : memref<4x128x128xbf16, #tpu.memory_space<vmem>>, vector<1x128x128xbf16>
    %3 = vector.shape_cast %2 : vector<1x128x128xbf16> to vector<128x128xbf16>
    %cst = arith.constant dense<0.000000e+00> : vector<16x128xf32>
    %4 = tpu.matmul %1, %3, %cst {dimension_numbers = #tpu.dot_dimension_numbers<[1], [0], [0], [1], [0, 0, 1, 1], [], []>} : vector<16x128xbf16>, vector<128x128xbf16>, vector<16x128xf32> -> vector<16x128xf32>
    %c0_5 = arith.constant 0 : index
    %c0_6 = arith.constant 0 : index
    %5 = vector.load %arg11[%c0_5, %c0_6] : memref<16x512xf32, #tpu.memory_space<vmem>>, vector<16x128xf32>
    tpu.vector_store %arg11[%c0_5, %c0_6], %4 {strides = array<i32>} : memref<16x512xf32, #tpu.memory_space<vmem>>, vector<16x128xf32>,
    %c1 = arith.constant 1 : index
    %c0_7 = arith.constant 0 : index
    %c0_8 = arith.constant 0 : index
    %6 = vector.load %arg2[%c1, %c0_7, %c0_8] : memref<4x16x128xbf16, #tpu.memory_space<vmem>>, vector<1x16x128xbf16>
    %7 = vector.shape_cast %6 : vector<1x16x128xbf16> to vector<16x128xbf16>
    %c1_9 = arith.constant 1 : index
    %c0_10 = arith.constant 0 : index
    %c0_11 = arith.constant 0 : index
    %8 = vector.load %arg1[%c1_9, %c0_10, %c0_11] : memref<4x128x128xbf16, #tpu.memory_space<vmem>>, vector<1x128x128xbf16>
    %9 = vector.shape_cast %8 : vector<1x128x128xbf16> to vector<128x128xbf16>
    %cst_12 = arith.constant dense<0.000000e+00> : vector<16x128xf32>
    %10 = tpu.matmul %7, %9, %cst_12 {dimension_numbers = #tpu.dot_dimension_numbers<[1], [0], [0], [1], [0, 0, 1, 1], [], []>} : vector<16x128xbf16>, vector<128x128xbf16>, vector<16x128xf32> -> vector<16x128xf32>
    %c0_13 = arith.constant 0 : index
    %c128 = arith.constant 128 : index
    %11 = vector.load %arg11[%c0_13, %c128] : memref<16x512xf32, #tpu.memory_space<vmem>>, vector<16x128xf32>
    tpu.vector_store %arg11[%c0_13, %c128], %10 {strides = array<i32>} : memref<16x512xf32, #tpu.memory_space<vmem>>, vector<16x128xf32>,
    %c2 = arith.constant 2 : index
    %c0_14 = arith.constant 0 : index
    %c0_15 = arith.constant 0 : index
    %12 = vector.load %arg2[%c2, %c0_14, %c0_15] : memref<4x16x128xbf16, #tpu.memory_space<vmem>>, vector<1x16x128xbf16>
    %13 = vector.shape_cast %12 : vector<1x16x128xbf16> to vector<16x128xbf16>
    %c2_16 = arith.constant 2 : index
    %c0_17 = arith.constant 0 : index
    %c0_18 = arith.constant 0 : index
    %14 = vector.load %arg1[%c2_16, %c0_17, %c0_18] : memref<4x128x128xbf16, #tpu.memory_space<vmem>>, vector<1x128x128xbf16>
    %15 = vector.shape_cast %14 : vector<1x128x128xbf16> to vector<128x128xbf16>
    %cst_19 = arith.constant dense<0.000000e+00> : vector<16x128xf32>
    %16 = tpu.matmul %13, %15, %cst_19 {dimension_numbers = #tpu.dot_dimension_numbers<[1], [0], [0], [1], [0, 0, 1, 1], [], []>} : vector<16x128xbf16>, vector<128x128xbf16>, vector<16x128xf32> -> vector<16x128xf32>
    %c0_20 = arith.constant 0 : index
    %c256 = arith.constant 256 : index
    %17 = vector.load %arg11[%c0_20, %c256] : memref<16x512xf32, #tpu.memory_space<vmem>>, vector<16x128xf32>
    tpu.vector_store %arg11[%c0_20, %c256], %16 {strides = array<i32>} : memref<16x512xf32, #tpu.memory_space<vmem>>, vector<16x128xf32>,
    %c3 = arith.constant 3 : index
    %c0_21 = arith.constant 0 : index
    %c0_22 = arith.constant 0 : index
    %18 = vector.load %arg2[%c3, %c0_21, %c0_22] : memref<4x16x128xbf16, #tpu.memory_space<vmem>>, vector<1x16x128xbf16>
    %19 = vector.shape_cast %18 : vector<1x16x128xbf16> to vector<16x128xbf16>
    %c3_23 = arith.constant 3 : index
    %c0_24 = arith.constant 0 : index
    %c0_25 = arith.constant 0 : index
    %20 = vector.load %arg1[%c3_23, %c0_24, %c0_25] : memref<4x128x128xbf16, #tpu.memory_space<vmem>>, vector<1x128x128xbf16>
    %21 = vector.shape_cast %20 : vector<1x128x128xbf16> to vector<128x128xbf16>
    %cst_26 = arith.constant dense<0.000000e+00> : vector<16x128xf32>
    %22 = tpu.matmul %19, %21, %cst_26 {dimension_numbers = #tpu.dot_dimension_numbers<[1], [0], [0], [1], [0, 0, 1, 1], [], []>} : vector<16x128xbf16>, vector<128x128xbf16>, vector<16x128xf32> -> vector<16x128xf32>
    %c0_27 = arith.constant 0 : index
    %c384 = arith.constant 384 : index
    %23 = vector.load %arg11[%c0_27, %c384] : memref<16x512xf32, #tpu.memory_space<vmem>>, vector<16x128xf32>
    tpu.vector_store %arg11[%c0_27, %c384], %22 {strides = array<i32>} : memref<16x512xf32, #tpu.memory_space<vmem>>, vector<16x128xf32>,
    %c0_28 = arith.constant 0 : index
    %c0_29 = arith.constant 0 : index
    %24 = vector.load %arg11[%c0_28, %c0_29] : memref<16x512xf32, #tpu.memory_space<vmem>>, vector<16x512xf32>
    %cst_30 = arith.constant dense<0.000000e+00> : vector<16xf32>
    %25 = vector.multi_reduction <add>, %24, %cst_30 [1] : vector<16x512xf32> to vector<16xf32>
    %26 = vector.shape_cast %25 : vector<16xf32> to vector<16x1xf32>
    %cst_31 = arith.constant 5.120000e+02 : f32
    %27 = vector.broadcast %cst_31 : f32 to vector<16x1xf32>
    %28 = arith.divf %26, %27 : vector<16x1xf32>
    %29 = arith.mulf %24, %24 : vector<16x512xf32>
    %cst_32 = arith.constant dense<0.000000e+00> : vector<16xf32>
    %30 = vector.multi_reduction <add>, %29, %cst_32 [1] : vector<16x512xf32> to vector<16xf32>
    %31 = vector.shape_cast %30 : vector<16xf32> to vector<16x1xf32>
    %cst_33 = arith.constant 5.120000e+02 : f32
    %32 = vector.broadcast %cst_33 : f32 to vector<16x1xf32>
    %33 = arith.divf %31, %32 : vector<16x1xf32>
    %34 = arith.mulf %28, %28 : vector<16x1xf32>
    %35 = arith.subf %33, %34 : vector<16x1xf32>
    %36 = vector.broadcast %28 : vector<16x1xf32> to vector<16x512xf32>
    %37 = arith.subf %24, %36 : vector<16x512xf32>
    %cst_34 = arith.constant 9.99999974E-6 : f32
    %38 = vector.broadcast %cst_34 : f32 to vector<16x1xf32>
    %39 = arith.addf %35, %38 : vector<16x1xf32>
    %40 = math.rsqrt %39 : vector<16x1xf32>
    %41 = vector.broadcast %40 : vector<16x1xf32> to vector<16x512xf32>
    %42 = arith.mulf %37, %41 : vector<16x512xf32>
    %c0_35 = arith.constant 0 : index
    %c0_36 = arith.constant 0 : index
    %43 = vector.load %arg3[%c0_35, %c0_36] : memref<16x1xf32, #tpu.memory_space<vmem>>, vector<16x1xf32>
    %44 = vector.broadcast %43 : vector<16x1xf32> to vector<16x512xf32>
    %45 = arith.mulf %42, %44 : vector<16x512xf32>
    %c0_37 = arith.constant 0 : index
    %c0_38 = arith.constant 0 : index
    %46 = vector.load %arg4[%c0_37, %c0_38] : memref<16x1xf32, #tpu.memory_space<vmem>>, vector<16x1xf32>
    %47 = vector.broadcast %46 : vector<16x1xf32> to vector<16x512xf32>
    %48 = arith.addf %45, %47 : vector<16x512xf32>
    %c0_39 = arith.constant 0 : index
    %c0_40 = arith.constant 0 : index
    %49 = vector.load %arg10[%c0_39, %c0_40] : memref<16x512xf32, #tpu.memory_space<vmem>>, vector<16x512xf32>
    tpu.vector_store %arg10[%c0_39, %c0_40], %48 {strides = array<i32>} : memref<16x512xf32, #tpu.memory_space<vmem>>, vector<16x512xf32>,
    %c0_41 = arith.constant 0 : index
    %c0_42 = arith.constant 0 : index
    %50 = vector.load %arg7[%c0_41, %c0_42] : memref<512x2xf32, #tpu.memory_space<vmem>>, vector<512x2xf32>
    %cst_43 = arith.constant dense<0.000000e+00> : vector<16x2xf32>
    %51 = tpu.matmul %48, %50, %cst_43 {dimension_numbers = #tpu.dot_dimension_numbers<[1], [0], [0], [1], [0, 0, 1, 1], [], []>} : vector<16x512xf32>, vector<512x2xf32>, vector<16x2xf32> -> vector<16x2xf32>
    %c0_44 = arith.constant 0 : index
    %c0_45 = arith.constant 0 : index
    %52 = vector.load %arg5[%c0_44, %c0_45] : memref<16x1xf32, #tpu.memory_space<vmem>>, vector<16x1xf32>
    %c0_46 = arith.constant 0 : index
    %c0_47 = arith.constant 0 : index
    %53 = vector.load %arg6[%c0_46, %c0_47] : memref<16x1xf32, #tpu.memory_space<vmem>>, vector<16x1xf32>
    %54 = vector.shape_cast %52 : vector<16x1xf32> to vector<16x1x1xf32>
    %55 = vector.shape_cast %51 : vector<16x2xf32> to vector<16x1x2xf32>
    %56 = vector.broadcast %54 : vector<16x1x1xf32> to vector<16x1x2xf32>
    %57 = arith.mulf %56, %55 : vector<16x1x2xf32>
    %cst_48 = arith.constant dense<0.000000e+00> : vector<1x2xf32>
    %58 = vector.multi_reduction <add>, %57, %cst_48 [0] : vector<16x1x2xf32> to vector<1x2xf32>
    %cst_49 = arith.constant 0.000000e+00 : f32
    %59 = vector.broadcast %cst_49 : f32 to vector<1x2xf32>
    %60 = arith.maximumf %58, %59 : vector<1x2xf32>
    %61 = vector.shape_cast %53 : vector<16x1xf32> to vector<16x1x1xf32>
    %62 = vector.shape_cast %60 : vector<1x2xf32> to vector<1x1x2xf32>
    %63 = vector.broadcast %61 : vector<16x1x1xf32> to vector<16x1x2xf32>
    %64 = vector.broadcast %62 : vector<1x1x2xf32> to vector<16x1x2xf32>
    %65 = arith.mulf %63, %64 : vector<16x1x2xf32>
    %cst_50 = arith.constant dense<0.000000e+00> : vector<16x2xf32>
    %66 = vector.multi_reduction <add>, %65, %cst_50 [1] : vector<16x1x2xf32> to vector<16x2xf32>
    %67 = arith.negf %66 : vector<16x2xf32>
    %68 = math.exp %67 : vector<16x2xf32>
    %cst_51 = arith.constant 1.000000e+00 : f32
    %69 = vector.broadcast %cst_51 : f32 to vector<16x2xf32>
    %70 = arith.addf %69, %68 : vector<16x2xf32>
    %71 = arith.divf %69, %70 : vector<16x2xf32>
    %c0_52 = arith.constant 0 : index
    %c0_53 = arith.constant 0 : index
    %72 = vector.load %arg8[%c0_52, %c0_53] : memref<2x512xf32, #tpu.memory_space<vmem>>, vector<2x512xf32>
    %cst_54 = arith.constant dense<0.000000e+00> : vector<16x512xf32>
    %73 = tpu.matmul %71, %72, %cst_54 {dimension_numbers = #tpu.dot_dimension_numbers<[1], [0], [0], [1], [0, 0, 1, 1], [], []>} : vector<16x2xf32>, vector<2x512xf32>, vector<16x512xf32> -> vector<16x512xf32>
    %cst_55 = arith.constant 1.000000e+00 : f32
    %74 = vector.broadcast %cst_55 : f32 to vector<16x512xf32>
    %75 = arith.addf %74, %73 : vector<16x512xf32>
    %76 = arith.mulf %48, %75 : vector<16x512xf32>
    %cst_56 = arith.constant 0.000000e+00 : f32
    %77 = vector.broadcast %cst_56 : f32 to vector<16x512xf32>
    %78 = arith.maximumf %76, %77 : vector<16x512xf32>
    %79 = arith.truncf %78 : vector<16x512xf32> to vector<16x512xbf16>
    %c0_57 = arith.constant 0 : index
    %c0_58 = arith.constant 0 : index
    %80 = vector.load %arg9[%c0_57, %c0_58] : memref<16x512xbf16, #tpu.memory_space<vmem>>, vector<16x512xbf16>
    tpu.vector_store %arg9[%c0_57, %c0_58], %79 {strides = array<i32>} : memref<16x512xbf16, #tpu.memory_space<vmem>>, vector<16x512xbf16>,
    return
  }
  func.func @transform_0(%arg0: i32) -> (i32, i32, i32) {
    %c0_i32 = arith.constant 0 : i32
    %c0_i32_0 = arith.constant 0 : i32
    %c0_i32_1 = arith.constant 0 : i32
    %c0_i32_2 = arith.constant 0 : i32
    return %c0_i32, %c0_i32_0, %c0_i32_1 : i32, i32, i32
  }
  func.func @transform_1(%arg0: i32) -> (i32, i32, i32) {
    %c0_i32 = arith.constant 0 : i32
    %c0_i32_0 = arith.constant 0 : i32
    %c0_i32_1 = arith.constant 0 : i32
    %c0_i32_2 = arith.constant 0 : i32
    return %c0_i32, %c0_i32_0, %c0_i32_1 : i32, i32, i32
  }
  func.func @transform_2(%arg0: i32) -> (i32, i32) {
    %c0_i32 = arith.constant 0 : i32
    %c0_i32_0 = arith.constant 0 : i32
    %c0_i32_1 = arith.constant 0 : i32
    return %c0_i32, %c0_i32_0 : i32, i32
  }
  func.func @transform_3(%arg0: i32) -> (i32, i32) {
    %c0_i32 = arith.constant 0 : i32
    %c0_i32_0 = arith.constant 0 : i32
    %c0_i32_1 = arith.constant 0 : i32
    return %c0_i32, %c0_i32_0 : i32, i32
  }
  func.func @transform_4(%arg0: i32) -> (i32, i32) {
    %c0_i32 = arith.constant 0 : i32
    %c0_i32_0 = arith.constant 0 : i32
    %c0_i32_1 = arith.constant 0 : i32
    return %c0_i32, %c0_i32_0 : i32, i32
  }
  func.func @transform_5(%arg0: i32) -> (i32, i32) {
    %c0_i32 = arith.constant 0 : i32
    %c0_i32_0 = arith.constant 0 : i32
    %c0_i32_1 = arith.constant 0 : i32
    return %c0_i32, %c0_i32_0 : i32, i32
  }
  func.func @transform_6(%arg0: i32) -> (i32, i32) {
    %c0_i32 = arith.constant 0 : i32
    %c0_i32_0 = arith.constant 0 : i32
    %c0_i32_1 = arith.constant 0 : i32
    return %c0_i32, %c0_i32_0 : i32, i32
  }
  func.func @transform_7(%arg0: i32) -> (i32, i32) {
    %c0_i32 = arith.constant 0 : i32
    %c0_i32_0 = arith.constant 0 : i32
    %c0_i32_1 = arith.constant 0 : i32
    return %c0_i32, %c0_i32_0 : i32, i32
  }
  func.func @transform_8(%arg0: i32) -> (i32, i32) {
    %c0_i32 = arith.constant 0 : i32
    %c0_i32_0 = arith.constant 0 : i32
    %c0_i32_1 = arith.constant 0 : i32
    return %c0_i32, %c0_i32_0 : i32, i32
  }
  func.func @transform_9(%arg0: i32) -> (i32, i32) {
    %c0_i32 = arith.constant 0 : i32
    %c0_i32_0 = arith.constant 0 : i32
    %c0_i32_1 = arith.constant 0 : i32
    return %c0_i32, %c0_i32_0 : i32, i32
  }
}

module attributes {stable_mosaic.version = 11 : i64} {
  func.func @_seconv_bn_cat_kernel(%arg0: i32, %arg1: memref<144x512xbf16, #tpu.memory_space<vmem>>, %arg2: memref<16x144xbf16, #tpu.memory_space<vmem>>, %arg3: memref<16x1xf32, #tpu.memory_space<vmem>>, %arg4: memref<16x1xf32, #tpu.memory_space<vmem>>, %arg5: memref<16x512xf32, #tpu.memory_space<vmem>>, %arg6: memref<32x512xf32, #tpu.memory_space<vmem>>) attributes {dimension_semantics = [#tpu.dimension_semantics<arbitrary>], iteration_bounds = array<i64: 1>, scalar_prefetch = 0 : i64, scratch_operands = 0 : i64, tpu.core_type = #tpu.core_type<tc>, window_params = [{pipeline_mode = #tpu.pipeline_mode<synchronous>, transform_indices = @transform_0, window_bounds = array<i64: 144, 512>}, {pipeline_mode = #tpu.pipeline_mode<synchronous>, transform_indices = @transform_1, window_bounds = array<i64: 16, 144>}, {pipeline_mode = #tpu.pipeline_mode<synchronous>, transform_indices = @transform_2, window_bounds = array<i64: 16, 1>}, {pipeline_mode = #tpu.pipeline_mode<synchronous>, transform_indices = @transform_3, window_bounds = array<i64: 16, 1>}, {pipeline_mode = #tpu.pipeline_mode<synchronous>, transform_indices = @transform_4, window_bounds = array<i64: 16, 512>}, {pipeline_mode = #tpu.pipeline_mode<synchronous>, transform_indices = @transform_5, window_bounds = array<i64: 32, 512>}]} {
    %c0 = arith.constant 0 : index
    %c0_0 = arith.constant 0 : index
    %0 = vector.load %arg2[%c0, %c0_0] : memref<16x144xbf16, #tpu.memory_space<vmem>>, vector<16x144xbf16>
    %c0_1 = arith.constant 0 : index
    %c0_2 = arith.constant 0 : index
    %1 = vector.load %arg1[%c0_1, %c0_2] : memref<144x512xbf16, #tpu.memory_space<vmem>>, vector<144x512xbf16>
    %cst = arith.constant dense<0.000000e+00> : vector<16x512xf32>
    %2 = tpu.matmul %0, %1, %cst {dimension_numbers = #tpu.dot_dimension_numbers<[1], [0], [0], [1], [0, 0, 1, 1], [], []>} : vector<16x144xbf16>, vector<144x512xbf16>, vector<16x512xf32> -> vector<16x512xf32>
    %cst_3 = arith.constant dense<0.000000e+00> : vector<16xf32>
    %3 = vector.multi_reduction <add>, %2, %cst_3 [1] : vector<16x512xf32> to vector<16xf32>
    %4 = vector.shape_cast %3 : vector<16xf32> to vector<16x1xf32>
    %cst_4 = arith.constant 5.120000e+02 : f32
    %5 = vector.broadcast %cst_4 : f32 to vector<16x1xf32>
    %6 = arith.divf %4, %5 : vector<16x1xf32>
    %7 = arith.mulf %2, %2 : vector<16x512xf32>
    %cst_5 = arith.constant dense<0.000000e+00> : vector<16xf32>
    %8 = vector.multi_reduction <add>, %7, %cst_5 [1] : vector<16x512xf32> to vector<16xf32>
    %9 = vector.shape_cast %8 : vector<16xf32> to vector<16x1xf32>
    %cst_6 = arith.constant 5.120000e+02 : f32
    %10 = vector.broadcast %cst_6 : f32 to vector<16x1xf32>
    %11 = arith.divf %9, %10 : vector<16x1xf32>
    %12 = arith.mulf %6, %6 : vector<16x1xf32>
    %13 = arith.subf %11, %12 : vector<16x1xf32>
    %14 = vector.broadcast %6 : vector<16x1xf32> to vector<16x512xf32>
    %15 = arith.subf %2, %14 : vector<16x512xf32>
    %cst_7 = arith.constant 9.99999974E-6 : f32
    %16 = vector.broadcast %cst_7 : f32 to vector<16x1xf32>
    %17 = arith.addf %13, %16 : vector<16x1xf32>
    %18 = math.rsqrt %17 : vector<16x1xf32>
    %19 = vector.broadcast %18 : vector<16x1xf32> to vector<16x512xf32>
    %20 = arith.mulf %15, %19 : vector<16x512xf32>
    %c0_8 = arith.constant 0 : index
    %c0_9 = arith.constant 0 : index
    %21 = vector.load %arg3[%c0_8, %c0_9] : memref<16x1xf32, #tpu.memory_space<vmem>>, vector<16x1xf32>
    %22 = vector.broadcast %21 : vector<16x1xf32> to vector<16x512xf32>
    %23 = arith.mulf %20, %22 : vector<16x512xf32>
    %c0_10 = arith.constant 0 : index
    %c0_11 = arith.constant 0 : index
    %24 = vector.load %arg4[%c0_10, %c0_11] : memref<16x1xf32, #tpu.memory_space<vmem>>, vector<16x1xf32>
    %25 = vector.broadcast %24 : vector<16x1xf32> to vector<16x512xf32>
    %26 = arith.addf %23, %25 : vector<16x512xf32>
    %c0_12 = arith.constant 0 : index
    %c0_13 = arith.constant 0 : index
    %27 = vector.load %arg6[%c0_12, %c0_13] : memref<32x512xf32, #tpu.memory_space<vmem>>, vector<16x512xf32>
    tpu.vector_store %arg6[%c0_12, %c0_13], %26 {strides = array<i32>} : memref<32x512xf32, #tpu.memory_space<vmem>>, vector<16x512xf32>,
    %c0_14 = arith.constant 0 : index
    %c0_15 = arith.constant 0 : index
    %28 = vector.load %arg5[%c0_14, %c0_15] : memref<16x512xf32, #tpu.memory_space<vmem>>, vector<16x512xf32>
    %c16 = arith.constant 16 : index
    %c0_16 = arith.constant 0 : index
    %29 = vector.load %arg6[%c16, %c0_16] : memref<32x512xf32, #tpu.memory_space<vmem>>, vector<16x512xf32>
    tpu.vector_store %arg6[%c16, %c0_16], %28 {strides = array<i32>} : memref<32x512xf32, #tpu.memory_space<vmem>>, vector<16x512xf32>,
    return
  }
  func.func @transform_0(%arg0: i32) -> (i32, i32) {
    %c0_i32 = arith.constant 0 : i32
    %c0_i32_0 = arith.constant 0 : i32
    %c0_i32_1 = arith.constant 0 : i32
    return %c0_i32, %c0_i32_0 : i32, i32
  }
  func.func @transform_1(%arg0: i32) -> (i32, i32) {
    %c0_i32 = arith.constant 0 : i32
    %c0_i32_0 = arith.constant 0 : i32
    %c0_i32_1 = arith.constant 0 : i32
    return %c0_i32, %c0_i32_0 : i32, i32
  }
  func.func @transform_2(%arg0: i32) -> (i32, i32) {
    %c0_i32 = arith.constant 0 : i32
    %c0_i32_0 = arith.constant 0 : i32
    %c0_i32_1 = arith.constant 0 : i32
    return %c0_i32, %c0_i32_0 : i32, i32
  }
  func.func @transform_3(%arg0: i32) -> (i32, i32) {
    %c0_i32 = arith.constant 0 : i32
    %c0_i32_0 = arith.constant 0 : i32
    %c0_i32_1 = arith.constant 0 : i32
    return %c0_i32, %c0_i32_0 : i32, i32
  }
  func.func @transform_4(%arg0: i32) -> (i32, i32) {
    %c0_i32 = arith.constant 0 : i32
    %c0_i32_0 = arith.constant 0 : i32
    %c0_i32_1 = arith.constant 0 : i32
    return %c0_i32, %c0_i32_0 : i32, i32
  }
  func.func @transform_5(%arg0: i32) -> (i32, i32) {
    %c0_i32 = arith.constant 0 : i32
    %c0_i32_0 = arith.constant 0 : i32
    %c0_i32_1 = arith.constant 0 : i32
    return %c0_i32, %c0_i32_0 : i32, i32
  }
}

</mosaic_0001>

<llo_original>
// kernel: a_call__.3
$region0: #{a_call__.3}
  #allocation0 [shape = 'u32[]', space=smem, size = 0x4, offset = 0x4, fixed_abs, tag = 'smem constant byte address 0x4 - core index']
  #allocation1 [shape = 'u32[144,128]{1,0:T(1,128)}', space=vmem, size = 0x12000, scoped, tag = 'internal scratch']
  %s0 = inlined_call_operand.vmem [shape: bf16[256,128], index: 0, kind: input, shape index: {}]
  %s1 = inlined_call_operand.vmem [shape: bf16[32,256], index: 1, kind: input, shape index: {}]
  %s2 = inlined_call_operand.vmem [shape: bf16[32,128], index: 2, kind: output, shape index: {}]
  %s3 = sld [smem:[#allocation0]]
  $region18: #{a_call__.3} parent=0
    _
  %s5 = ssub.s32 1, %s3
  %s6 = scalar_select 0, %s5, %s3
  // Predicated region
  $region2: #{a_call__.3} parent=0 // pred_check
    _
  $region3: #{a_call__.3} parent=0 // pred_check_branch
    %8 = sbr.rel (0) target = $region5
  $region4: #{a_call__.3} parent=0 // pred_region
    _
  $region5: #{a_call__.3} parent=0 // pred_fallthru
    _
  // Predicated region
  $region6: #{a_call__.3} parent=0 // pred_check
    _
  $region7: #{a_call__.3} parent=0 // pred_check_branch
    %10 = sbr.rel (0) target = $region9
  $region8: #{a_call__.3} parent=0 // pred_region
    _
  $region9: #{a_call__.3} parent=0 // pred_fallthru
    _
  %v12 = vld [vmem:[%s1] sm:$0xff]
  %v13 = vld [vmem:[%s1 + $0x8] sm:$0xff]
  %v14 = vld [vmem:[%s1 + $0x10] sm:$0xff]
  %v15 = vld [vmem:[%s1 + $0x18] sm:$0xff]
  %v16 = vld [vmem:[%s0] sm:$0xf]
  %v17 = vld [vmem:[%s0 + $0x4] sm:$0xf]
  %v18 = vld [vmem:[%s0 + $0x8] sm:$0xf]
  %v19 = vld [vmem:[%s0 + $0xc] sm:$0xf]
  %v20 = vld [vmem:[%s0 + $0x10] sm:$0xf]
  %v21 = vld [vmem:[%s0 + $0x14] sm:$0xf]
  %v22 = vld [vmem:[%s0 + $0x18] sm:$0xf]
  %v23 = vld [vmem:[%s0 + $0x1c] sm:$0xf]
  %v24 = vld [vmem:[%s0 + $0x20] sm:$0xf]
  %v25 = vld [vmem:[%s0 + $0x24] sm:$0xf]
  %v26 = vld [vmem:[%s0 + $0x28] sm:$0xf]
  %v27 = vld [vmem:[%s0 + $0x2c] sm:$0xf]
  %v28 = vld [vmem:[%s0 + $0x30] sm:$0xf]
  %v29 = vld [vmem:[%s0 + $0x34] sm:$0xf]
  %v30 = vld [vmem:[%s0 + $0x38] sm:$0xf]
  %v31 = vld [vmem:[%s0 + $0x3c] sm:$0xf]
  %v32 = vld [vmem:[%s0 + $0x40] sm:$0xf]
  %v33 = vld [vmem:[%s0 + $0x44] sm:$0xf]
  %v34 = vld [vmem:[%s0 + $0x48] sm:$0xf]
  %v35 = vld [vmem:[%s0 + $0x4c] sm:$0xf]
  %v36 = vld [vmem:[%s0 + $0x50] sm:$0xf]
  %v37 = vld [vmem:[%s0 + $0x54] sm:$0xf]
  %v38 = vld [vmem:[%s0 + $0x58] sm:$0xf]
  %v39 = vld [vmem:[%s0 + $0x5c] sm:$0xf]
  %v40 = vld [vmem:[%s0 + $0x60] sm:$0xf]
  %v41 = vld [vmem:[%s0 + $0x64] sm:$0xf]
  %v42 = vld [vmem:[%s0 + $0x68] sm:$0xf]
  %v43 = vld [vmem:[%s0 + $0x6c] sm:$0xf]
  %v44 = vld [vmem:[%s0 + $0x70] sm:$0xf]
  %v45 = vld [vmem:[%s0 + $0x74] sm:$0xf]
  %v46 = vld [vmem:[%s0 + $0x78] sm:$0xf]
  %v47 = vld [vmem:[%s0 + $0x7c] sm:$0xf]
  %v52 = vunpack.c.l.b16 %v12
  %v53 = vunpack.c.h.b16 %v12
  %v54 = vunpack.c.l.b16 %v13
  %v55 = vunpack.c.h.b16 %v13
  %v56 = vunpack.c.l.b16 %v14
  %v57 = vunpack.c.h.b16 %v14
  %v58 = vunpack.c.l.b16 %v15
  %v59 = vunpack.c.h.b16 %v15
  %v60 = vpack.c.b16 %v54, %v52
  %v61 = vpack.c.b16 %v55, %v53
  %v62 = vpack.c.b16 %v58, %v56
  %v63 = vpack.c.b16 %v59, %v57
  %v100 = vunpack.c.l.b16 %v16
  %v101 = vunpack.c.l.b16 %v17
  %v102 = vunpack.c.l.b16 %v18
  %v103 = vunpack.c.l.b16 %v19
  %v104 = vunpack.c.l.b16 %v20
  %v105 = vunpack.c.l.b16 %v21
  %v106 = vunpack.c.l.b16 %v22
  %v107 = vunpack.c.l.b16 %v23
  %v108 = vunpack.c.l.b16 %v24
  %v109 = vunpack.c.l.b16 %v25
  %v110 = vunpack.c.l.b16 %v26
  %v111 = vunpack.c.l.b16 %v27
  %v112 = vunpack.c.l.b16 %v28
  %v113 = vunpack.c.l.b16 %v29
  %v114 = vunpack.c.l.b16 %v30
  %v115 = vunpack.c.l.b16 %v31
  %v116 = vunpack.c.l.b16 %v32
  %v117 = vunpack.c.l.b16 %v33
  %v118 = vunpack.c.l.b16 %v34
  %v119 = vunpack.c.l.b16 %v35
  %v120 = vunpack.c.l.b16 %v36
  %v121 = vunpack.c.l.b16 %v37
  %v122 = vunpack.c.l.b16 %v38
  %v123 = vunpack.c.l.b16 %v39
  %v124 = vunpack.c.l.b16 %v40
  %v125 = vunpack.c.l.b16 %v41
  %v126 = vunpack.c.l.b16 %v42
  %v127 = vunpack.c.l.b16 %v43
  %v128 = vunpack.c.l.b16 %v44
  %v129 = vunpack.c.l.b16 %v45
  %v130 = vunpack.c.l.b16 %v46
  %v131 = vunpack.c.l.b16 %v47
  %v132 = vpack.c.b16 %v101, %v100
  %v133 = vpack.c.b16 %v103, %v102
  %v134 = vpack.c.b16 %v105, %v104
  %v135 = vpack.c.b16 %v107, %v106
  %v136 = vpack.c.b16 %v109, %v108
  %v137 = vpack.c.b16 %v111, %v110
  %v138 = vpack.c.b16 %v113, %v112
  %v139 = vpack.c.b16 %v115, %v114
  %v140 = vpack.c.b16 %v117, %v116
  %v141 = vpack.c.b16 %v119, %v118
  %v142 = vpack.c.b16 %v121, %v120
  %v143 = vpack.c.b16 %v123, %v122
  %v144 = vpack.c.b16 %v125, %v124
  %v145 = vpack.c.b16 %v127, %v126
  %v146 = vpack.c.b16 %v129, %v128
  %v147 = vpack.c.b16 %v131, %v130
  %164 = vmatprep.subr.bf16.mxu0 0
  %165 = vmatpush1.bf16.msra.mxu0 %v139
  %166 = vmatprep.subr.bf16.mxu0 0
  %167 = vmatpush1.bf16.msra.mxu0 %v138
  %168 = vmatprep.subr.bf16.mxu0 0
  %169 = vmatpush1.bf16.msra.mxu0 %v137
  %170 = vmatprep.subr.bf16.mxu0 0
  %171 = vmatpush1.bf16.msra.mxu0 %v136
  %172 = vmatprep.subr.bf16.mxu0 0
  %173 = vmatpush1.bf16.msra.mxu0 %v135
  %174 = vmatprep.subr.bf16.mxu0 0
  %175 = vmatpush1.bf16.msra.mxu0 %v134
  %176 = vmatprep.subr.bf16.mxu0 0
  %177 = vmatpush1.bf16.msra.mxu0 %v133
  %178 = vmatprep.subr.bf16.mxu0 0
  %179 = vmatpush1.bf16.msra.mxu0 %v132
  %180 = vmatprep.subr.bf16.mxu0 0
  %181 = vmatpush2.bf16.msra.mxu0 %v147
  %182 = vmatprep.subr.bf16.mxu0 0
  %183 = vmatpush2.bf16.msra.mxu0 %v146
  %184 = vmatprep.subr.bf16.mxu0 0
  %185 = vmatpush2.bf16.msra.mxu0 %v145
  %186 = vmatprep.subr.bf16.mxu0 0
  %187 = vmatpush2.bf16.msra.mxu0 %v144
  %188 = vmatprep.subr.bf16.mxu0 0
  %189 = vmatpush2.bf16.msra.mxu0 %v143
  %190 = vmatprep.subr.bf16.mxu0 0
  %191 = vmatpush2.bf16.msra.mxu0 %v142
  %192 = vmatprep.subr.bf16.mxu0 0
  %193 = vmatpush2.bf16.msra.mxu0 %v141
  %194 = vmatprep.subr.bf16.mxu0 0
  %195 = vmatpush2.bf16.msra.mxu0 %v140
  %196 = vmatprep.mubr.bf16.mxu0 %v61
  %197 = vmatmul.mubr.bf16.gmra.mxu0 %v60
  %v198 = vpop.f32.mrf.mxu0
  %v199 = vadd.f32 0.0, %v198
  %v200 = vpop.f32.mrf.mxu0
  %v201 = vpop.f32.mrf.mxu0
  %v202 = vadd.f32 0.0, %v201
  %v203 = vpop.f32.mrf.mxu0
  %204 = vmatprep.mubr.bf16.mxu0 %v63
  %205 = vmatmul.mubr.bf16.gmra.mxu0 %v62
  %v206 = vpop.f32.mrf.mxu0
  %v207 = vadd.f32 0.0, %v206
  %v208 = vpop.f32.mrf.mxu0
  %v209 = vpop.f32.mrf.mxu0
  %v210 = vadd.f32 0.0, %v209
  %v211 = vpop.f32.mrf.mxu0
  %212 = vdwg.mxu0
  %v213 = vmax.f32 %v199, 0.0
  %v214 = vmax.f32 %v202, 0.0
  %v215 = vmax.f32 %v207, 0.0
  %v216 = vmax.f32 %v210, 0.0
  %v217 = vpack.c.bf16 %v214, %v213
  %v218 = vpack.c.bf16 %v216, %v215
  %v221 = vunpack.c.l.b16 %v217
  %v222 = vunpack.c.h.b16 %v217
  %v223 = vunpack.c.l.b16 %v218
  %v224 = vunpack.c.h.b16 %v218
  %v225 = vpack.c.b16 %v221, %v221
  %v226 = vpack.c.b16 %v222, %v222
  %v227 = vpack.c.b16 %v223, %v223
  %v228 = vpack.c.b16 %v224, %v224
  %233 = vst [vmem:[%s2] sm:$0xf] %v225
  %234 = vst [vmem:[%s2 + $0x4] sm:$0xf] %v226
  %235 = vst [vmem:[%s2 + $0x8] sm:$0xf] %v227
  %236 = vst [vmem:[%s2 + $0xc] sm:$0xf] %v228
  // Predicated region
  $region10: #{a_call__.3} parent=0 // pred_check
    _
  $region11: #{a_call__.3} parent=0 // pred_check_branch
    %238 = sbr.rel (0) target = $region13
  $region12: #{a_call__.3} parent=0 // pred_region
    _
  $region13: #{a_call__.3} parent=0 // pred_fallthru
    _
  // Predicated region
  $region14: #{a_call__.3} parent=0 // pred_check
    _
  $region15: #{a_call__.3} parent=0 // pred_check_branch
    %240 = sbr.rel (0) target = $region17
  $region16: #{a_call__.3} parent=0 // pred_region
    _
  $region17: #{a_call__.3} parent=0 // pred_fallthru
    _

// kernel: a_call__.4
$region0: #{a_call__.4}
  #allocation0 [shape = 'u32[]', space=smem, size = 0x4, offset = 0x4, fixed_abs, tag = 'smem constant byte address 0x4 - core index']
  #allocation1 [shape = 'u32[144,128]{1,0:T(1,128)}', space=vmem, size = 0x12000, scoped, tag = 'internal scratch']
  #allocation2 [shape = 'f32[16,512]{1,0:T(8,128)}', space=vmem, size = 0x8000, scoped, tag = 'scratch operand']
  %s0 = inlined_call_operand.vmem [shape: bf16[4,128,128], index: 0, kind: input, shape index: {}]
  %s1 = inlined_call_operand.vmem [shape: bf16[4,16,128], index: 1, kind: input, shape index: {}]
  %s2 = inlined_call_operand.vmem [shape: f32[16,1], index: 2, kind: input, shape index: {}]
  %s3 = inlined_call_operand.vmem [shape: f32[16,1], index: 3, kind: input, shape index: {}]
  %s4 = inlined_call_operand.vmem [shape: f32[16,1], index: 4, kind: input, shape index: {}]
  %s5 = inlined_call_operand.vmem [shape: f32[16,1], index: 5, kind: input, shape index: {}]
  %s6 = inlined_call_operand.vmem [shape: f32[512,2], index: 6, kind: input, shape index: {}]
  %s7 = inlined_call_operand.vmem [shape: f32[2,512], index: 7, kind: input, shape index: {}]
  %s8 = inlined_call_operand.vmem [shape: bf16[16,512], index: 8, kind: output, shape index: {0}]
  %s9 = inlined_call_operand.vmem [shape: f32[16,512], index: 9, kind: output, shape index: {1}]
  %10 = xla_tuple %s8, %s9
  %s11 = sld [smem:[#allocation0]]
  $region50: #{a_call__.4} parent=0
    _
  %s13 = ssub.s32 1, %s11
  %s14 = scalar_select 0, %s13, %s11
  // Predicated region
  $region2: #{a_call__.4} parent=0 // pred_check
    _
  $region3: #{a_call__.4} parent=0 // pred_check_branch
    %16 = sbr.rel (0) target = $region5
  $region4: #{a_call__.4} parent=0 // pred_region
    _
  $region5: #{a_call__.4} parent=0 // pred_fallthru
    _
  // Predicated region
  $region6: #{a_call__.4} parent=0 // pred_check
    _
  $region7: #{a_call__.4} parent=0 // pred_check_branch
    %18 = sbr.rel (0) target = $region9
  $region8: #{a_call__.4} parent=0 // pred_region
    _
  $region9: #{a_call__.4} parent=0 // pred_fallthru
    _
  // Predicated region
  $region10: #{a_call__.4} parent=0 // pred_check
    _
  $region11: #{a_call__.4} parent=0 // pred_check_branch
    %20 = sbr.rel (0) target = $region13
  $region12: #{a_call__.4} parent=0 // pred_region
    _
  $region13: #{a_call__.4} parent=0 // pred_fallthru
    _
  // Predicated region
  $region14: #{a_call__.4} parent=0 // pred_check
    _
  $region15: #{a_call__.4} parent=0 // pred_check_branch
    %22 = sbr.rel (0) target = $region17
  $region16: #{a_call__.4} parent=0 // pred_region
    _
  $region17: #{a_call__.4} parent=0 // pred_fallthru
    _
  // Predicated region
  $region18: #{a_call__.4} parent=0 // pred_check
    _
  $region19: #{a_call__.4} parent=0 // pred_check_branch
    %24 = sbr.rel (0) target = $region21
  $region20: #{a_call__.4} parent=0 // pred_region
    _
  $region21: #{a_call__.4} parent=0 // pred_fallthru
    _
  // Predicated region
  $region22: #{a_call__.4} parent=0 // pred_check
    _
  $region23: #{a_call__.4} parent=0 // pred_check_branch
    %26 = sbr.rel (0) target = $region25
  $region24: #{a_call__.4} parent=0 // pred_region
    _
  $region25: #{a_call__.4} parent=0 // pred_fallthru
    _
  // Predicated region
  $region26: #{a_call__.4} parent=0 // pred_check
    _
  $region27: #{a_call__.4} parent=0 // pred_check_branch
    %28 = sbr.rel (0) target = $region29
  $region28: #{a_call__.4} parent=0 // pred_region
    _
  $region29: #{a_call__.4} parent=0 // pred_fallthru
    _
  // Predicated region
  $region30: #{a_call__.4} parent=0 // pred_check
    _
  $region31: #{a_call__.4} parent=0 // pred_check_branch
    %30 = sbr.rel (0) target = $region33
  $region32: #{a_call__.4} parent=0 // pred_region
    _
  $region33: #{a_call__.4} parent=0 // pred_fallthru
    _
  %v32 = vld [vmem:[%s1] sm:$0xf]
  %v33 = vld [vmem:[%s1 + $0x4] sm:$0xf]
  %v34 = vld [vmem:[%s0] sm:$0xf]
  %v35 = vld [vmem:[%s0 + $0x4] sm:$0xf]
  %v36 = vld [vmem:[%s0 + $0x8] sm:$0xf]
  %v37 = vld [vmem:[%s0 + $0xc] sm:$0xf]
  %v38 = vld [vmem:[%s0 + $0x10] sm:$0xf]
  %v39 = vld [vmem:[%s0 + $0x14] sm:$0xf]
  %v40 = vld [vmem:[%s0 + $0x18] sm:$0xf]
  %v41 = vld [vmem:[%s0 + $0x1c] sm:$0xf]
  %v42 = vld [vmem:[%s0 + $0x20] sm:$0xf]
  %v43 = vld [vmem:[%s0 + $0x24] sm:$0xf]
  %v44 = vld [vmem:[%s0 + $0x28] sm:$0xf]
  %v45 = vld [vmem:[%s0 + $0x2c] sm:$0xf]
  %v46 = vld [vmem:[%s0 + $0x30] sm:$0xf]
  %v47 = vld [vmem:[%s0 + $0x34] sm:$0xf]
  %v48 = vld [vmem:[%s0 + $0x38] sm:$0xf]
  %v49 = vld [vmem:[%s0 + $0x3c] sm:$0xf]
  %v52 = vunpack.c.l.b16 %v32
  %v53 = vunpack.c.l.b16 %v33
  %v54 = vpack.c.b16 %v53, %v52
  %v72 = vunpack.c.l.b16 %v34
  %v73 = vunpack.c.l.b16 %v35
  %v74 = vunpack.c.l.b16 %v36
  %v75 = vunpack.c.l.b16 %v37
  %v76 = vunpack.c.l.b16 %v38
  %v77 = vunpack.c.l.b16 %v39
  %v78 = vunpack.c.l.b16 %v40
  %v79 = vunpack.c.l.b16 %v41
  %v80 = vunpack.c.l.b16 %v42
  %v81 = vunpack.c.l.b16 %v43
  %v82 = vunpack.c.l.b16 %v44
  %v83 = vunpack.c.l.b16 %v45
  %v84 = vunpack.c.l.b16 %v46
  %v85 = vunpack.c.l.b16 %v47
  %v86 = vunpack.c.l.b16 %v48
  %v87 = vunpack.c.l.b16 %v49
  %v88 = vpack.c.b16 %v73, %v72
  %v89 = vpack.c.b16 %v75, %v74
  %v90 = vpack.c.b16 %v77, %v76
  %v91 = vpack.c.b16 %v79, %v78
  %v92 = vpack.c.b16 %v81, %v80
  %v93 = vpack.c.b16 %v83, %v82
  %v94 = vpack.c.b16 %v85, %v84
  %v95 = vpack.c.b16 %v87, %v86
  %104 = vmatprep.subr.bf16.mxu0 0
  %105 = vmatpush1.bf16.msra.mxu0 %v95
  %106 = vmatprep.subr.bf16.mxu0 0
  %107 = vmatpush1.bf16.msra.mxu0 %v94
  %108 = vmatprep.subr.bf16.mxu0 0
  %109 = vmatpush1.bf16.msra.mxu0 %v93
  %110 = vmatprep.subr.bf16.mxu0 0
  %111 = vmatpush1.bf16.msra.mxu0 %v92
  %112 = vmatprep.subr.bf16.mxu0 0
  %113 = vmatpush1.bf16.msra.mxu0 %v91
  %114 = vmatprep.subr.bf16.mxu0 0
  %115 = vmatpush1.bf16.msra.mxu0 %v90
  %116 = vmatprep.subr.bf16.mxu0 0
  %117 = vmatpush1.bf16.msra.mxu0 %v89
  %118 = vmatprep.subr.bf16.mxu0 0
  %119 = vmatpush1.bf16.msra.mxu0 %v88
  %120 = vmatprep.subr.bf16.mxu0 0
  %121 = vmatpush2.bf16.msra.mxu0 0
  %122 = vmatprep.subr.bf16.mxu0 0
  %123 = vmatpush2.bf16.msra.mxu0 0
  %124 = vmatprep.subr.bf16.mxu0 0
  %125 = vmatpush2.bf16.msra.mxu0 0
  %126 = vmatprep.subr.bf16.mxu0 0
  %127 = vmatpush2.bf16.msra.mxu0 0
  %128 = vmatprep.subr.bf16.mxu0 0
  %129 = vmatpush2.bf16.msra.mxu0 0
  %130 = vmatprep.subr.bf16.mxu0 0
  %131 = vmatpush2.bf16.msra.mxu0 0
  %132 = vmatprep.subr.bf16.mxu0 0
  %133 = vmatpush2.bf16.msra.mxu0 0
  %134 = vmatprep.subr.bf16.mxu0 0
  %135 = vmatpush2.bf16.msra.mxu0 0
  %136 = vmatprep.mubr.bf16.mxu0 0
  %137 = vmatmul.mubr.bf16.gmra.mxu0 %v54
  %v138 = vpop.f32.mrf.mxu0
  %v139 = vadd.f32 0.0, %v138
  %v140 = vpop.f32.mrf.mxu0
  %v141 = vpop.f32.mrf.mxu0
  %v142 = vadd.f32 0.0, %v141
  %v143 = vpop.f32.mrf.mxu0
  %144 = vdwg.mxu0
  %145 = vst [vmem:[#allocation2] sm:$0xff] %v139
  %146 = vst [vmem:[#allocation2 + $0x20] sm:$0xff] %v142
  %s147 = scalar_lea.vmem %s1, 8
  %v148 = vld [vmem:[%s147] sm:$0xf]
  %v149 = vld [vmem:[%s147 + $0x4] sm:$0xf]
  %s150 = scalar_lea.vmem %s0, 64
  %v151 = vld [vmem:[%s150] sm:$0xf]
  %v152 = vld [vmem:[%s150 + $0x4] sm:$0xf]
  %v153 = vld [vmem:[%s150 + $0x8] sm:$0xf]
  %v154 = vld [vmem:[%s150 + $0xc] sm:$0xf]
  %v155 = vld [vmem:[%s150 + $0x10] sm:$0xf]
  %v156 = vld [vmem:[%s150 + $0x14] sm:$0xf]
  %v157 = vld [vmem:[%s150 + $0x18] sm:$0xf]
  %v158 = vld [vmem:[%s150 + $0x1c] sm:$0xf]
  %v159 = vld [vmem:[%s150 + $0x20] sm:$0xf]
  %v160 = vld [vmem:[%s150 + $0x24] sm:$0xf]
  %v161 = vld [vmem:[%s150 + $0x28] sm:$0xf]
  %v162 = vld [vmem:[%s150 + $0x2c] sm:$0xf]
  %v163 = vld [vmem:[%s150 + $0x30] sm:$0xf]
  %v164 = vld [vmem:[%s150 + $0x34] sm:$0xf]
  %v165 = vld [vmem:[%s150 + $0x38] sm:$0xf]
  %v166 = vld [vmem:[%s150 + $0x3c] sm:$0xf]
  %v169 = vunpack.c.l.b16 %v148
  %v170 = vunpack.c.l.b16 %v149
  %v171 = vpack.c.b16 %v170, %v169
  %v189 = vunpack.c.l.b16 %v151
  %v190 = vunpack.c.l.b16 %v152
  %v191 = vunpack.c.l.b16 %v153
  %v192 = vunpack.c.l.b16 %v154
  %v193 = vunpack.c.l.b16 %v155
  %v194 = vunpack.c.l.b16 %v156
  %v195 = vunpack.c.l.b16 %v157
  %v196 = vunpack.c.l.b16 %v158
  %v197 = vunpack.c.l.b16 %v159
  %v198 = vunpack.c.l.b16 %v160
  %v199 = vunpack.c.l.b16 %v161
  %v200 = vunpack.c.l.b16 %v162
  %v201 = vunpack.c.l.b16 %v163
  %v202 = vunpack.c.l.b16 %v164
  %v203 = vunpack.c.l.b16 %v165
  %v204 = vunpack.c.l.b16 %v166
  %v205 = vpack.c.b16 %v190, %v189
  %v206 = vpack.c.b16 %v192, %v191
  %v207 = vpack.c.b16 %v194, %v193
  %v208 = vpack.c.b16 %v196, %v195
  %v209 = vpack.c.b16 %v198, %v197
  %v210 = vpack.c.b16 %v200, %v199
  %v211 = vpack.c.b16 %v202, %v201
  %v212 = vpack.c.b16 %v204, %v203
  %221 = vmatprep.subr.bf16.mxu0 0
  %222 = vmatpush1.bf16.msra.mxu0 %v212
  %223 = vmatprep.subr.bf16.mxu0 0
  %224 = vmatpush1.bf16.msra.mxu0 %v211
  %225 = vmatprep.subr.bf16.mxu0 0
  %226 = vmatpush1.bf16.msra.mxu0 %v210
  %227 = vmatprep.subr.bf16.mxu0 0
  %228 = vmatpush1.bf16.msra.mxu0 %v209
  %229 = vmatprep.subr.bf16.mxu0 0
  %230 = vmatpush1.bf16.msra.mxu0 %v208
  %231 = vmatprep.subr.bf16.mxu0 0
  %232 = vmatpush1.bf16.msra.mxu0 %v207
  %233 = vmatprep.subr.bf16.mxu0 0
  %234 = vmatpush1.bf16.msra.mxu0 %v206
  %235 = vmatprep.subr.bf16.mxu0 0
  %236 = vmatpush1.bf16.msra.mxu0 %v205
  %237 = vmatprep.subr.bf16.mxu0 0
  %238 = vmatpush2.bf16.msra.mxu0 0
  %239 = vmatprep.subr.bf16.mxu0 0
  %240 = vmatpush2.bf16.msra.mxu0 0
  %241 = vmatprep.subr.bf16.mxu0 0
  %242 = vmatpush2.bf16.msra.mxu0 0
  %243 = vmatprep.subr.bf16.mxu0 0
  %244 = vmatpush2.bf16.msra.mxu0 0
  %245 = vmatprep.subr.bf16.mxu0 0
  %246 = vmatpush2.bf16.msra.mxu0 0
  %247 = vmatprep.subr.bf16.mxu0 0
  %248 = vmatpush2.bf16.msra.mxu0 0
  %249 = vmatprep.subr.bf16.mxu0 0
  %250 = vmatpush2.bf16.msra.mxu0 0
  %251 = vmatprep.subr.bf16.mxu0 0
  %252 = vmatpush2.bf16.msra.mxu0 0
  %253 = vmatprep.mubr.bf16.mxu0 0
  %254 = vmatmul.mubr.bf16.gmra.mxu0 %v171
  %v255 = vpop.f32.mrf.mxu0
  %v256 = vadd.f32 0.0, %v255
  %v257 = vpop.f32.mrf.mxu0
  %v258 = vpop.f32.mrf.mxu0
  %v259 = vadd.f32 0.0, %v258
  %v260 = vpop.f32.mrf.mxu0
  %261 = vdwg.mxu0
  %262 = vst [vmem:[#allocation2 + $0x8] sm:$0xff] %v256
  %263 = vst [vmem:[#allocation2 + $0x28] sm:$0xff] %v259
  %s264 = scalar_lea.vmem %s1, 16
  %v265 = vld [vmem:[%s264] sm:$0xf]
  %v266 = vld [vmem:[%s264 + $0x4] sm:$0xf]
  %s267 = scalar_lea.vmem %s0, 128
  %v268 = vld [vmem:[%s267] sm:$0xf]
  %v269 = vld [vmem:[%s267 + $0x4] sm:$0xf]
  %v270 = vld [vmem:[%s267 + $0x8] sm:$0xf]
  %v271 = vld [vmem:[%s267 + $0xc] sm:$0xf]
  %v272 = vld [vmem:[%s267 + $0x10] sm:$0xf]
  %v273 = vld [vmem:[%s267 + $0x14] sm:$0xf]
  %v274 = vld [vmem:[%s267 + $0x18] sm:$0xf]
  %v275 = vld [vmem:[%s267 + $0x1c] sm:$0xf]
  %v276 = vld [vmem:[%s267 + $0x20] sm:$0xf]
  %v277 = vld [vmem:[%s267 + $0x24] sm:$0xf]
  %v278 = vld [vmem:[%s267 + $0x28] sm:$0xf]
  %v279 = vld [vmem:[%s267 + $0x2c] sm:$0xf]
  %v280 = vld [vmem:[%s267 + $0x30] sm:$0xf]
  %v281 = vld [vmem:[%s267 + $0x34] sm:$0xf]
  %v282 = vld [vmem:[%s267 + $0x38] sm:$0xf]
  %v283 = vld [vmem:[%s267 + $0x3c] sm:$0xf]
  %v286 = vunpack.c.l.b16 %v265
  %v287 = vunpack.c.l.b16 %v266
  %v288 = vpack.c.b16 %v287, %v286
  %v306 = vunpack.c.l.b16 %v268
  %v307 = vunpack.c.l.b16 %v269
  %v308 = vunpack.c.l.b16 %v270
  %v309 = vunpack.c.l.b16 %v271
  %v310 = vunpack.c.l.b16 %v272
  %v311 = vunpack.c.l.b16 %v273
  %v312 = vunpack.c.l.b16 %v274
  %v313 = vunpack.c.l.b16 %v275
  %v314 = vunpack.c.l.b16 %v276
  %v315 = vunpack.c.l.b16 %v277
  %v316 = vunpack.c.l.b16 %v278
  %v317 = vunpack.c.l.b16 %v279
  %v318 = vunpack.c.l.b16 %v280
  %v319 = vunpack.c.l.b16 %v281
  %v320 = vunpack.c.l.b16 %v282
  %v321 = vunpack.c.l.b16 %v283
  %v322 = vpack.c.b16 %v307, %v306
  %v323 = vpack.c.b16 %v309, %v308
  %v324 = vpack.c.b16 %v311, %v310
  %v325 = vpack.c.b16 %v313, %v312
  %v326 = vpack.c.b16 %v315, %v314
  %v327 = vpack.c.b16 %v317, %v316
  %v328 = vpack.c.b16 %v319, %v318
  %v329 = vpack.c.b16 %v321, %v320
  %338 = vmatprep.subr.bf16.mxu0 0
  %339 = vmatpush1.bf16.msra.mxu0 %v329
  %340 = vmatprep.subr.bf16.mxu0 0
  %341 = vmatpush1.bf16.msra.mxu0 %v328
  %342 = vmatprep.subr.bf16.mxu0 0
  %343 = vmatpush1.bf16.msra.mxu0 %v327
  %344 = vmatprep.subr.bf16.mxu0 0
  %345 = vmatpush1.bf16.msra.mxu0 %v326
  %346 = vmatprep.subr.bf16.mxu0 0
  %347 = vmatpush1.bf16.msra.mxu0 %v325
  %348 = vmatprep.subr.bf16.mxu0 0
  %349 = vmatpush1.bf16.msra.mxu0 %v324
  %350 = vmatprep.subr.bf16.mxu0 0
  %351 = vmatpush1.bf16.msra.mxu0 %v323
  %352 = vmatprep.subr.bf16.mxu0 0
  %353 = vmatpush1.bf16.msra.mxu0 %v322
  %354 = vmatprep.subr.bf16.mxu0 0
  %355 = vmatpush2.bf16.msra.mxu0 0
  %356 = vmatprep.subr.bf16.mxu0 0
  %357 = vmatpush2.bf16.msra.mxu0 0
  %358 = vmatprep.subr.bf16.mxu0 0
  %359 = vmatpush2.bf16.msra.mxu0 0
  %360 = vmatprep.subr.bf16.mxu0 0
  %361 = vmatpush2.bf16.msra.mxu0 0
  %362 = vmatprep.subr.bf16.mxu0 0
  %363 = vmatpush2.bf16.msra.mxu0 0
  %364 = vmatprep.subr.bf16.mxu0 0
  %365 = vmatpush2.bf16.msra.mxu0 0
  %366 = vmatprep.subr.bf16.mxu0 0
  %367 = vmatpush2.bf16.msra.mxu0 0
  %368 = vmatprep.subr.bf16.mxu0 0
  %369 = vmatpush2.bf16.msra.mxu0 0
  %370 = vmatprep.mubr.bf16.mxu0 0
  %371 = vmatmul.mubr.bf16.gmra.mxu0 %v288
  %v372 = vpop.f32.mrf.mxu0
  %v373 = vadd.f32 0.0, %v372
  %v374 = vpop.f32.mrf.mxu0
  %v375 = vpop.f32.mrf.mxu0
  %v376 = vadd.f32 0.0, %v375
  %v377 = vpop.f32.mrf.mxu0
  %378 = vdwg.mxu0
  %379 = vst [vmem:[#allocation2 + $0x10] sm:$0xff] %v373
  %380 = vst [vmem:[#allocation2 + $0x30] sm:$0xff] %v376
  %s381 = scalar_lea.vmem %s1, 24
  %v382 = vld [vmem:[%s381] sm:$0xf]
  %v383 = vld [vmem:[%s381 + $0x4] sm:$0xf]
  %s384 = scalar_lea.vmem %s0, 192
  %v385 = vld [vmem:[%s384] sm:$0xf]
  %v386 = vld [vmem:[%s384 + $0x4] sm:$0xf]
  %v387 = vld [vmem:[%s384 + $0x8] sm:$0xf]
  %v388 = vld [vmem:[%s384 + $0xc] sm:$0xf]
  %v389 = vld [vmem:[%s384 + $0x10] sm:$0xf]
  %v390 = vld [vmem:[%s384 + $0x14] sm:$0xf]
  %v391 = vld [vmem:[%s384 + $0x18] sm:$0xf]
  %v392 = vld [vmem:[%s384 + $0x1c] sm:$0xf]
  %v393 = vld [vmem:[%s384 + $0x20] sm:$0xf]
  %v394 = vld [vmem:[%s384 + $0x24] sm:$0xf]
  %v395 = vld [vmem:[%s384 + $0x28] sm:$0xf]
  %v396 = vld [vmem:[%s384 + $0x2c] sm:$0xf]
  %v397 = vld [vmem:[%s384 + $0x30] sm:$0xf]
  %v398 = vld [vmem:[%s384 + $0x34] sm:$0xf]
  %v399 = vld [vmem:[%s384 + $0x38] sm:$0xf]
  %v400 = vld [vmem:[%s384 + $0x3c] sm:$0xf]
  %v403 = vunpack.c.l.b16 %v382
  %v404 = vunpack.c.l.b16 %v383
  %v405 = vpack.c.b16 %v404, %v403
  %v423 = vunpack.c.l.b16 %v385
  %v424 = vunpack.c.l.b16 %v386
  %v425 = vunpack.c.l.b16 %v387
  %v426 = vunpack.c.l.b16 %v388
  %v427 = vunpack.c.l.b16 %v389
  %v428 = vunpack.c.l.b16 %v390
  %v429 = vunpack.c.l.b16 %v391
  %v430 = vunpack.c.l.b16 %v392
  %v431 = vunpack.c.l.b16 %v393
  %v432 = vunpack.c.l.b16 %v394
  %v433 = vunpack.c.l.b16 %v395
  %v434 = vunpack.c.l.b16 %v396
  %v435 = vunpack.c.l.b16 %v397
  %v436 = vunpack.c.l.b16 %v398
  %v437 = vunpack.c.l.b16 %v399
  %v438 = vunpack.c.l.b16 %v400
  %v439 = vpack.c.b16 %v424, %v423
  %v440 = vpack.c.b16 %v426, %v425
  %v441 = vpack.c.b16 %v428, %v427
  %v442 = vpack.c.b16 %v430, %v429
  %v443 = vpack.c.b16 %v432, %v431
  %v444 = vpack.c.b16 %v434, %v433
  %v445 = vpack.c.b16 %v436, %v435
  %v446 = vpack.c.b16 %v438, %v437
  %455 = vmatprep.subr.bf16.mxu0 0
  %456 = vmatpush1.bf16.msra.mxu0 %v446
  %457 = vmatprep.subr.bf16.mxu0 0
  %458 = vmatpush1.bf16.msra.mxu0 %v445
  %459 = vmatprep.subr.bf16.mxu0 0
  %460 = vmatpush1.bf16.msra.mxu0 %v444
  %461 = vmatprep.subr.bf16.mxu0 0
  %462 = vmatpush1.bf16.msra.mxu0 %v443
  %463 = vmatprep.subr.bf16.mxu0 0
  %464 = vmatpush1.bf16.msra.mxu0 %v442
  %465 = vmatprep.subr.bf16.mxu0 0
  %466 = vmatpush1.bf16.msra.mxu0 %v441
  %467 = vmatprep.subr.bf16.mxu0 0
  %468 = vmatpush1.bf16.msra.mxu0 %v440
  %469 = vmatprep.subr.bf16.mxu0 0
  %470 = vmatpush1.bf16.msra.mxu0 %v439
  %471 = vmatprep.subr.bf16.mxu0 0
  %472 = vmatpush2.bf16.msra.mxu0 0
  %473 = vmatprep.subr.bf16.mxu0 0
  %474 = vmatpush2.bf16.msra.mxu0 0
  %475 = vmatprep.subr.bf16.mxu0 0
  %476 = vmatpush2.bf16.msra.mxu0 0
  %477 = vmatprep.subr.bf16.mxu0 0
  %478 = vmatpush2.bf16.msra.mxu0 0
  %479 = vmatprep.subr.bf16.mxu0 0
  %480 = vmatpush2.bf16.msra.mxu0 0
  %481 = vmatprep.subr.bf16.mxu0 0
  %482 = vmatpush2.bf16.msra.mxu0 0
  %483 = vmatprep.subr.bf16.mxu0 0
  %484 = vmatpush2.bf16.msra.mxu0 0
  %485 = vmatprep.subr.bf16.mxu0 0
  %486 = vmatpush2.bf16.msra.mxu0 0
  %487 = vmatprep.mubr.bf16.mxu0 0
  %488 = vmatmul.mubr.bf16.gmra.mxu0 %v405
  %v489 = vpop.f32.mrf.mxu0
  %v490 = vadd.f32 0.0, %v489
  %v491 = vpop.f32.mrf.mxu0
  %v492 = vpop.f32.mrf.mxu0
  %v493 = vadd.f32 0.0, %v492
  %v494 = vpop.f32.mrf.mxu0
  %495 = vdwg.mxu0
  %496 = vst [vmem:[#allocation2 + $0x18] sm:$0xff] %v490
  %497 = vst [vmem:[#allocation2 + $0x38] sm:$0xff] %v493
  %v498 = vld [vmem:[#allocation2] sm:$0xff]
  %v499 = vld [vmem:[#allocation2 + $0x8] sm:$0xff]
  %v500 = vld [vmem:[#allocation2 + $0x10] sm:$0xff]
  %v501 = vld [vmem:[#allocation2 + $0x18] sm:$0xff]
  %v502 = vld [vmem:[#allocation2 + $0x20] sm:$0xff]
  %v503 = vld [vmem:[#allocation2 + $0x28] sm:$0xff]
  %v504 = vld [vmem:[#allocation2 + $0x30] sm:$0xff]
  %v505 = vld [vmem:[#allocation2 + $0x38] sm:$0xff]
  %v506 = vadd.f32 %v498, %v499
  %v507 = vadd.f32 %v506, %v500
  %v508 = vadd.f32 %v507, %v501
  %509 = vadd.xlane.f32.xlu0 %v508
  %v510 = vpop.xlane.xlu0 %509
  %v511 = vadd.f32 %v502, %v503
  %v512 = vadd.f32 %v511, %v504
  %v513 = vadd.f32 %v512, %v505
  %514 = vadd.xlane.f32.xlu0 %v513
  %v515 = vpop.xlane.xlu0 %514
  %v516 = vrcp.pop 512.0
  %v517 = vmul.f32 %v510, %v516
  %v518 = vmul.f32 %v515, %v516
  %v519 = vmul.f32 %v498, %v498
  %v520 = vmul.f32 %v499, %v499
  %v521 = vmul.f32 %v500, %v500
  %v522 = vmul.f32 %v501, %v501
  %v523 = vmul.f32 %v502, %v502
  %v524 = vmul.f32 %v503, %v503
  %v525 = vmul.f32 %v504, %v504
  %v526 = vmul.f32 %v505, %v505
  %v527 = vadd.f32 %v519, %v520
  %v528 = vadd.f32 %v527, %v521
  %v529 = vadd.f32 %v528, %v522
  %530 = vadd.xlane.f32.xlu0 %v529
  %v531 = vpop.xlane.xlu0 %530
  %v532 = vadd.f32 %v523, %v524
  %v533 = vadd.f32 %v532, %v525
  %v534 = vadd.f32 %v533, %v526
  %535 = vadd.xlane.f32.xlu0 %v534
  %v536 = vpop.xlane.xlu0 %535
  %v537 = vmul.f32 %v531, %v516
  %v538 = vmul.f32 %v536, %v516
  %v539 = vmul.f32 %v517, %v517
  %v540 = vmul.f32 %v518, %v518
  %v541 = vsub.f32 %v537, %v539
  %v542 = vsub.f32 %v538, %v540
  %v543 = vsub.f32 %v498, %v517
  %v544 = vsub.f32 %v499, %v517
  %v545 = vsub.f32 %v500, %v517
  %v546 = vsub.f32 %v501, %v517
  %v547 = vsub.f32 %v502, %v518
  %v548 = vsub.f32 %v503, %v518
  %v549 = vsub.f32 %v504, %v518
  %v550 = vsub.f32 %v505, %v518
  %v551 = vadd.f32 %v541, 1e-05
  %v552 = vadd.f32 %v542, 1e-05
  %v553 = vrsqrt.pop %v551
  %v554 = vrsqrt.pop %v552
  %v555 = vmul.f32 %v543, %v553
  %v556 = vmul.f32 %v544, %v553
  %v557 = vmul.f32 %v545, %v553
  %v558 = vmul.f32 %v546, %v553
  %v559 = vmul.f32 %v547, %v554
  %v560 = vmul.f32 %v548, %v554
  %v561 = vmul.f32 %v549, %v554
  %v562 = vmul.f32 %v550, %v554
  %v563 = vld [vmem:[%s2] sm:$0xff]
  %v564 = vld [vmem:[%s2 + $0x8] sm:$0xff]
  %566 = vset.pattern.permute.xlu0 0
  %567 = vperm.xlu0 %566, %v563
  %v568 = vpop.permute.xlu0 %567
  %571 = vset.pattern.permute.xlu0 0
  %572 = vperm.xlu0 %571, %v564
  %v573 = vpop.permute.xlu0 %572
  %v575 = vmul.f32 %v555, %v568
  %v576 = vmul.f32 %v556, %v568
  %v577 = vmul.f32 %v557, %v568
  %v578 = vmul.f32 %v558, %v568
  %v579 = vmul.f32 %v559, %v573
  %v580 = vmul.f32 %v560, %v573
  %v581 = vmul.f32 %v561, %v573
  %v582 = vmul.f32 %v562, %v573
  %v583 = vld [vmem:[%s3] sm:$0xff]
  %v584 = vld [vmem:[%s3 + $0x8] sm:$0xff]
  %586 = vset.pattern.permute.xlu0 0
  %587 = vperm.xlu0 %586, %v583
  %v588 = vpop.permute.xlu0 %587
  %591 = vset.pattern.permute.xlu0 0
  %592 = vperm.xlu0 %591, %v584
  %v593 = vpop.permute.xlu0 %592
  %v595 = vadd.f32 %v575, %v588
  %v596 = vadd.f32 %v576, %v588
  %v597 = vadd.f32 %v577, %v588
  %v598 = vadd.f32 %v578, %v588
  %v599 = vadd.f32 %v579, %v593
  %v600 = vadd.f32 %v580, %v593
  %v601 = vadd.f32 %v581, %v593
  %v602 = vadd.f32 %v582, %v593
  %603 = vst [vmem:[%s9] sm:$0xff] %v595
  %604 = vst [vmem:[%s9 + $0x8] sm:$0xff] %v596
  %605 = vst [vmem:[%s9 + $0x10] sm:$0xff] %v597
  %606 = vst [vmem:[%s9 + $0x18] sm:$0xff] %v598
  %607 = vst [vmem:[%s9 + $0x20] sm:$0xff] %v599
  %608 = vst [vmem:[%s9 + $0x28] sm:$0xff] %v600
  %609 = vst [vmem:[%s9 + $0x30] sm:$0xff] %v601
  %610 = vst [vmem:[%s9 + $0x38] sm:$0xff] %v602
  %v611 = vld [vmem:[%s6] sm:$0xff]
  %v612 = vld [vmem:[%s6 + $0x8] sm:$0xff]
  %v613 = vld [vmem:[%s6 + $0x10] sm:$0xff]
  %v614 = vld [vmem:[%s6 + $0x18] sm:$0xff]
  %v615 = vld [vmem:[%s6 + $0x20] sm:$0xff]
  %v616 = vld [vmem:[%s6 + $0x28] sm:$0xff]
  %v617 = vld [vmem:[%s6 + $0x30] sm:$0xff]
  %v618 = vld [vmem:[%s6 + $0x38] sm:$0xff]
  %v619 = vld [vmem:[%s6 + $0x40] sm:$0xff]
  %v620 = vld [vmem:[%s6 + $0x48] sm:$0xff]
  %v621 = vld [vmem:[%s6 + $0x50] sm:$0xff]
  %v622 = vld [vmem:[%s6 + $0x58] sm:$0xff]
  %v623 = vld [vmem:[%s6 + $0x60] sm:$0xff]
  %v624 = vld [vmem:[%s6 + $0x68] sm:$0xff]
  %v625 = vld [vmem:[%s6 + $0x70] sm:$0xff]
  %v626 = vld [vmem:[%s6 + $0x78] sm:$0xff]
  %v627 = vld [vmem:[%s6 + $0x80] sm:$0xff]
  %v628 = vld [vmem:[%s6 + $0x88] sm:$0xff]
  %v629 = vld [vmem:[%s6 + $0x90] sm:$0xff]
  %v630 = vld [vmem:[%s6 + $0x98] sm:$0xff]
  %v631 = vld [vmem:[%s6 + $0xa0] sm:$0xff]
  %v632 = vld [vmem:[%s6 + $0xa8] sm:$0xff]
  %v633 = vld [vmem:[%s6 + $0xb0] sm:$0xff]
  %v634 = vld [vmem:[%s6 + $0xb8] sm:$0xff]
  %v635 = vld [vmem:[%s6 + $0xc0] sm:$0xff]
  %v636 = vld [vmem:[%s6 + $0xc8] sm:$0xff]
  %v637 = vld [vmem:[%s6 + $0xd0] sm:$0xff]
  %v638 = vld [vmem:[%s6 + $0xd8] sm:$0xff]
  %v639 = vld [vmem:[%s6 + $0xe0] sm:$0xff]
  %v640 = vld [vmem:[%s6 + $0xe8] sm:$0xff]
  %v641 = vld [vmem:[%s6 + $0xf0] sm:$0xff]
  %v642 = vld [vmem:[%s6 + $0xf8] sm:$0xff]
  %v643 = vld [vmem:[%s6 + $0x100] sm:$0xff]
  %v644 = vld [vmem:[%s6 + $0x108] sm:$0xff]
  %v645 = vld [vmem:[%s6 + $0x110] sm:$0xff]
  %v646 = vld [vmem:[%s6 + $0x118] sm:$0xff]
  %v647 = vld [vmem:[%s6 + $0x120] sm:$0xff]
  %v648 = vld [vmem:[%s6 + $0x128] sm:$0xff]
  %v649 = vld [vmem:[%s6 + $0x130] sm:$0xff]
  %v650 = vld [vmem:[%s6 + $0x138] sm:$0xff]
  %v651 = vld [vmem:[%s6 + $0x140] sm:$0xff]
  %v652 = vld [vmem:[%s6 + $0x148] sm:$0xff]
  %v653 = vld [vmem:[%s6 + $0x150] sm:$0xff]
  %v654 = vld [vmem:[%s6 + $0x158] sm:$0xff]
  %v655 = vld [vmem:[%s6 + $0x160] sm:$0xff]
  %v656 = vld [vmem:[%s6 + $0x168] sm:$0xff]
  %v657 = vld [vmem:[%s6 + $0x170] sm:$0xff]
  %v658 = vld [vmem:[%s6 + $0x178] sm:$0xff]
  %v659 = vld [vmem:[%s6 + $0x180] sm:$0xff]
  %v660 = vld [vmem:[%s6 + $0x188] sm:$0xff]
  %v661 = vld [vmem:[%s6 + $0x190] sm:$0xff]
  %v662 = vld [vmem:[%s6 + $0x198] sm:$0xff]
  %v663 = vld [vmem:[%s6 + $0x1a0] sm:$0xff]
  %v664 = vld [vmem:[%s6 + $0x1a8] sm:$0xff]
  %v665 = vld [vmem:[%s6 + $0x1b0] sm:$0xff]
  %v666 = vld [vmem:[%s6 + $0x1b8] sm:$0xff]
  %v667 = vld [vmem:[%s6 + $0x1c0] sm:$0xff]
  %v668 = vld [vmem:[%s6 + $0x1c8] sm:$0xff]
  %v669 = vld [vmem:[%s6 + $0x1d0] sm:$0xff]
  %v670 = vld [vmem:[%s6 + $0x1d8] sm:$0xff]
  %v671 = vld [vmem:[%s6 + $0x1e0] sm:$0xff]
  %v672 = vld [vmem:[%s6 + $0x1e8] sm:$0xff]
  %v673 = vld [vmem:[%s6 + $0x1f0] sm:$0xff]
  %v674 = vld [vmem:[%s6 + $0x1f8] sm:$0xff]
  %675 = vmatprep.subr.mxu0 0.0
  %676 = vmatpush1.msra.mxu0 %v626
  %677 = vmatprep.subr.mxu0 0.0
  %678 = vmatpush1.msra.mxu0 %v625
  %679 = vmatprep.subr.mxu0 0.0
  %680 = vmatpush1.msra.mxu0 %v624
  %681 = vmatprep.subr.mxu0 0.0
  %682 = vmatpush1.msra.mxu0 %v623
  %683 = vmatprep.subr.mxu0 0.0
  %684 = vmatpush1.msra.mxu0 %v622
  %685 = vmatprep.subr.mxu0 0.0
  %686 = vmatpush1.msra.mxu0 %v621
  %687 = vmatprep.subr.mxu0 0.0
  %688 = vmatpush1.msra.mxu0 %v620
  %689 = vmatprep.subr.mxu0 0.0
  %690 = vmatpush1.msra.mxu0 %v619
  %691 = vmatprep.subr.mxu0 0.0
  %692 = vmatpush1.msra.mxu0 %v618
  %693 = vmatprep.subr.mxu0 0.0
  %694 = vmatpush1.msra.mxu0 %v617
  %695 = vmatprep.subr.mxu0 0.0
  %696 = vmatpush1.msra.mxu0 %v616
  %697 = vmatprep.subr.mxu0 0.0
  %698 = vmatpush1.msra.mxu0 %v615
  %699 = vmatprep.subr.mxu0 0.0
  %700 = vmatpush1.msra.mxu0 %v614
  %701 = vmatprep.subr.mxu0 0.0
  %702 = vmatpush1.msra.mxu0 %v613
  %703 = vmatprep.subr.mxu0 0.0
  %704 = vmatpush1.msra.mxu0 %v612
  %705 = vmatprep.subr.mxu0 0.0
  %706 = vmatpush1.msra.mxu0 %v611
  %707 = vmatprep.subr.mxu0 0.0
  %708 = vmatpush2.msra.mxu0 %v642
  %709 = vmatprep.subr.mxu0 0.0
  %710 = vmatpush2.msra.mxu0 %v641
  %711 = vmatprep.subr.mxu0 0.0
  %712 = vmatpush2.msra.mxu0 %v640
  %713 = vmatprep.subr.mxu0 0.0
  %714 = vmatpush2.msra.mxu0 %v639
  %715 = vmatprep.subr.mxu0 0.0
  %716 = vmatpush2.msra.mxu0 %v638
  %717 = vmatprep.subr.mxu0 0.0
  %718 = vmatpush2.msra.mxu0 %v637
  %719 = vmatprep.subr.mxu0 0.0
  %720 = vmatpush2.msra.mxu0 %v636
  %721 = vmatprep.subr.mxu0 0.0
  %722 = vmatpush2.msra.mxu0 %v635
  %723 = vmatprep.subr.mxu0 0.0
  %724 = vmatpush2.msra.mxu0 %v634
  %725 = vmatprep.subr.mxu0 0.0
  %726 = vmatpush2.msra.mxu0 %v633
  %727 = vmatprep.subr.mxu0 0.0
  %728 = vmatpush2.msra.mxu0 %v632
  %729 = vmatprep.subr.mxu0 0.0
  %730 = vmatpush2.msra.mxu0 %v631
  %731 = vmatprep.subr.mxu0 0.0
  %732 = vmatpush2.msra.mxu0 %v630
  %733 = vmatprep.subr.mxu0 0.0
  %734 = vmatpush2.msra.mxu0 %v629
  %735 = vmatprep.subr.mxu0 0.0
  %736 = vmatpush2.msra.mxu0 %v628
  %737 = vmatprep.subr.mxu0 0.0
  %738 = vmatpush2.msra.mxu0 %v627
  %739 = vmatprep.mubr.f32.mxu0 %v596
  %740 = vmatmul.mubr.f32.gmra.mxu0 %v595
  %v741 = vpop.f32.mrf.mxu0
  %v742 = vadd.f32 0.0, %v741
  %v743 = vpop.f32.mrf.mxu0
  %744 = vmatprep.mubr.f32.mxu0 %v600
  %745 = vmatmul.mubr.f32.gmra.mxu0 %v599
  %v746 = vpop.f32.mrf.mxu0
  %v747 = vadd.f32 0.0, %v746
  %v748 = vpop.f32.mrf.mxu0
  %749 = vdwg.mxu0
  %750 = vmatprep.subr.mxu0 0.0
  %751 = vmatpush1.msra.mxu0 %v658
  %752 = vmatprep.subr.mxu0 0.0
  %753 = vmatpush1.msra.mxu0 %v657
  %754 = vmatprep.subr.mxu0 0.0
  %755 = vmatpush1.msra.mxu0 %v656
  %756 = vmatprep.subr.mxu0 0.0
  %757 = vmatpush1.msra.mxu0 %v655
  %758 = vmatprep.subr.mxu0 0.0
  %759 = vmatpush1.msra.mxu0 %v654
  %760 = vmatprep.subr.mxu0 0.0
  %761 = vmatpush1.msra.mxu0 %v653
  %762 = vmatprep.subr.mxu0 0.0
  %763 = vmatpush1.msra.mxu0 %v652
  %764 = vmatprep.subr.mxu0 0.0
  %765 = vmatpush1.msra.mxu0 %v651
  %766 = vmatprep.subr.mxu0 0.0
  %767 = vmatpush1.msra.mxu0 %v650
  %768 = vmatprep.subr.mxu0 0.0
  %769 = vmatpush1.msra.mxu0 %v649
  %770 = vmatprep.subr.mxu0 0.0
  %771 = vmatpush1.msra.mxu0 %v648
  %772 = vmatprep.subr.mxu0 0.0
  %773 = vmatpush1.msra.mxu0 %v647
  %774 = vmatprep.subr.mxu0 0.0
  %775 = vmatpush1.msra.mxu0 %v646
  %776 = vmatprep.subr.mxu0 0.0
  %777 = vmatpush1.msra.mxu0 %v645
  %778 = vmatprep.subr.mxu0 0.0
  %779 = vmatpush1.msra.mxu0 %v644
  %780 = vmatprep.subr.mxu0 0.0
  %781 = vmatpush1.msra.mxu0 %v643
  %782 = vmatprep.subr.mxu0 0.0
  %783 = vmatpush2.msra.mxu0 %v674
  %784 = vmatprep.subr.mxu0 0.0
  %785 = vmatpush2.msra.mxu0 %v673
  %786 = vmatprep.subr.mxu0 0.0
  %787 = vmatpush2.msra.mxu0 %v672
  %788 = vmatprep.subr.mxu0 0.0
  %789 = vmatpush2.msra.mxu0 %v671
  %790 = vmatprep.subr.mxu0 0.0
  %791 = vmatpush2.msra.mxu0 %v670
  %792 = vmatprep.subr.mxu0 0.0
  %793 = vmatpush2.msra.mxu0 %v669
  %794 = vmatprep.subr.mxu0 0.0
  %795 = vmatpush2.msra.mxu0 %v668
  %796 = vmatprep.subr.mxu0 0.0
  %797 = vmatpush2.msra.mxu0 %v667
  %798 = vmatprep.subr.mxu0 0.0
  %799 = vmatpush2.msra.mxu0 %v666
  %800 = vmatprep.subr.mxu0 0.0
  %801 = vmatpush2.msra.mxu0 %v665
  %802 = vmatprep.subr.mxu0 0.0
  %803 = vmatpush2.msra.mxu0 %v664
  %804 = vmatprep.subr.mxu0 0.0
  %805 = vmatpush2.msra.mxu0 %v663
  %806 = vmatprep.subr.mxu0 0.0
  %807 = vmatpush2.msra.mxu0 %v662
  %808 = vmatprep.subr.mxu0 0.0
  %809 = vmatpush2.msra.mxu0 %v661
  %810 = vmatprep.subr.mxu0 0.0
  %811 = vmatpush2.msra.mxu0 %v660
  %812 = vmatprep.subr.mxu0 0.0
  %813 = vmatpush2.msra.mxu0 %v659
  %814 = vmatprep.mubr.f32.mxu0 %v598
  %815 = vmatmul.mubr.f32.gmra.mxu0 %v597
  %v816 = vpop.f32.mrf.mxu0
  %v817 = vadd.f32 %v742, %v816
  %v818 = vpop.f32.mrf.mxu0
  %819 = vmatprep.mubr.f32.mxu0 %v602
  %820 = vmatmul.mubr.f32.gmra.mxu0 %v601
  %v821 = vpop.f32.mrf.mxu0
  %v822 = vadd.f32 %v747, %v821
  %v823 = vpop.f32.mrf.mxu0
  %824 = vdwg.mxu0
  %v825 = vld [vmem:[%s4] sm:$0xff]
  %v826 = vld [vmem:[%s4 + $0x8] sm:$0xff]
  %v827 = vld [vmem:[%s5] sm:$0xff]
  %v828 = vld [vmem:[%s5 + $0x8] sm:$0xff]
  %v831 = vcombine.high %v825, %v825
  %v833 = vunpack.c.l.s4 1966171168
  %v834 = vunpack.c.0.s8 %v833
  %v835 = vlaneseq
  %v836 = vshrl.u32 %v835, 7
  %v837 = vsub.s32 %v834, %v836
  %v838 = vrot.slane %v825, %v837
  %v840 = vunpack.c.l.s4 1966171168
  %v841 = vunpack.c.0.s8 %v840
  %v842 = vlaneseq
  %v843 = vshrl.u32 %v842, 7
  %v844 = vsub.s32 %v841, %v843
  %v845 = vrot.slane %v831, %v844
  %v846 = vcombine.high %v838, %v838
  %v847 = vcombine.high %v845, %v845
  %v849 = vunpack.c.l.s4 1966171168
  %v850 = vunpack.c.0.s8 %v849
  %v851 = vlaneseq
  %v852 = vshrl.u32 %v851, 7
  %v853 = vsub.s32 %v850, %v852
  %v854 = vrot.slane %v838, %v853
  %v856 = vunpack.c.l.s4 1966171168
  %v857 = vunpack.c.0.s8 %v856
  %v858 = vlaneseq
  %v859 = vshrl.u32 %v858, 7
  %v860 = vsub.s32 %v857, %v859
  %v861 = vrot.slane %v845, %v860
  %v863 = vunpack.c.l.s4 1966171168
  %v864 = vunpack.c.0.s8 %v863
  %v865 = vlaneseq
  %v866 = vshrl.u32 %v865, 7
  %v867 = vsub.s32 %v864, %v866
  %v868 = vrot.slane %v846, %v867
  %v870 = vunpack.c.l.s4 1966171168
  %v871 = vunpack.c.0.s8 %v870
  %v872 = vlaneseq
  %v873 = vshrl.u32 %v872, 7
  %v874 = vsub.s32 %v871, %v873
  %v875 = vrot.slane %v847, %v874
  %v876 = vcombine.high %v854, %v854
  %v877 = vcombine.high %v861, %v861
  %v878 = vcombine.high %v868, %v868
  %v879 = vcombine.high %v875, %v875
  %v880 = vcombine.high %v826, %v826
  %v882 = vunpack.c.l.s4 1966171168
  %v883 = vunpack.c.0.s8 %v882
  %v884 = vlaneseq
  %v885 = vshrl.u32 %v884, 7
  %v886 = vsub.s32 %v883, %v885
  %v887 = vrot.slane %v826, %v886
  %v889 = vunpack.c.l.s4 1966171168
  %v890 = vunpack.c.0.s8 %v889
  %v891 = vlaneseq
  %v892 = vshrl.u32 %v891, 7
  %v893 = vsub.s32 %v890, %v892
  %v894 = vrot.slane %v880, %v893
  %v895 = vcombine.high %v887, %v887
  %v896 = vcombine.high %v894, %v894
  %v898 = vunpack.c.l.s4 1966171168
  %v899 = vunpack.c.0.s8 %v898
  %v900 = vlaneseq
  %v901 = vshrl.u32 %v900, 7
  %v902 = vsub.s32 %v899, %v901
  %v903 = vrot.slane %v887, %v902
  %v905 = vunpack.c.l.s4 1966171168
  %v906 = vunpack.c.0.s8 %v905
  %v907 = vlaneseq
  %v908 = vshrl.u32 %v907, 7
  %v909 = vsub.s32 %v906, %v908
  %v910 = vrot.slane %v894, %v909
  %v912 = vunpack.c.l.s4 1966171168
  %v913 = vunpack.c.0.s8 %v912
  %v914 = vlaneseq
  %v915 = vshrl.u32 %v914, 7
  %v916 = vsub.s32 %v913, %v915
  %v917 = vrot.slane %v895, %v916
  %v919 = vunpack.c.l.s4 1966171168
  %v920 = vunpack.c.0.s8 %v919
  %v921 = vlaneseq
  %v922 = vshrl.u32 %v921, 7
  %v923 = vsub.s32 %v920, %v922
  %v924 = vrot.slane %v896, %v923
  %v925 = vcombine.high %v903, %v903
  %v926 = vcombine.high %v910, %v910
  %v927 = vcombine.high %v917, %v917
  %v928 = vcombine.high %v924, %v924
  %v931 = vcombine.high %v817, %v817
  %v933 = vunpack.c.l.s4 1966171168
  %v934 = vunpack.c.0.s8 %v933
  %v935 = vlaneseq
  %v936 = vshrl.u32 %v935, 7
  %v937 = vsub.s32 %v934, %v936
  %v938 = vrot.slane %v817, %v937
  %v940 = vunpack.c.l.s4 1966171168
  %v941 = vunpack.c.0.s8 %v940
  %v942 = vlaneseq
  %v943 = vshrl.u32 %v942, 7
  %v944 = vsub.s32 %v941, %v943
  %v945 = vrot.slane %v931, %v944
  %v946 = vcombine.high %v938, %v938
  %v947 = vcombine.high %v945, %v945
  %v949 = vunpack.c.l.s4 1966171168
  %v950 = vunpack.c.0.s8 %v949
  %v951 = vlaneseq
  %v952 = vshrl.u32 %v951, 7
  %v953 = vsub.s32 %v950, %v952
  %v954 = vrot.slane %v938, %v953
  %v956 = vunpack.c.l.s4 1966171168
  %v957 = vunpack.c.0.s8 %v956
  %v958 = vlaneseq
  %v959 = vshrl.u32 %v958, 7
  %v960 = vsub.s32 %v957, %v959
  %v961 = vrot.slane %v945, %v960
  %v963 = vunpack.c.l.s4 1966171168
  %v964 = vunpack.c.0.s8 %v963
  %v965 = vlaneseq
  %v966 = vshrl.u32 %v965, 7
  %v967 = vsub.s32 %v964, %v966
  %v968 = vrot.slane %v946, %v967
  %v970 = vunpack.c.l.s4 1966171168
  %v971 = vunpack.c.0.s8 %v970
  %v972 = vlaneseq
  %v973 = vshrl.u32 %v972, 7
  %v974 = vsub.s32 %v971, %v973
  %v975 = vrot.slane %v947, %v974
  %v976 = vcombine.high %v954, %v954
  %v977 = vcombine.high %v961, %v961
  %v978 = vcombine.high %v968, %v968
  %v979 = vcombine.high %v975, %v975
  %v980 = vcombine.high %v822, %v822
  %v982 = vunpack.c.l.s4 1966171168
  %v983 = vunpack.c.0.s8 %v982
  %v984 = vlaneseq
  %v985 = vshrl.u32 %v984, 7
  %v986 = vsub.s32 %v983, %v985
  %v987 = vrot.slane %v822, %v986
  %v989 = vunpack.c.l.s4 1966171168
  %v990 = vunpack.c.0.s8 %v989
  %v991 = vlaneseq
  %v992 = vshrl.u32 %v991, 7
  %v993 = vsub.s32 %v990, %v992
  %v994 = vrot.slane %v980, %v993
  %v995 = vcombine.high %v987, %v987
  %v996 = vcombine.high %v994, %v994
  %v998 = vunpack.c.l.s4 1966171168
  %v999 = vunpack.c.0.s8 %v998
  %v1000 = vlaneseq
  %v1001 = vshrl.u32 %v1000, 7
  %v1002 = vsub.s32 %v999, %v1001
  %v1003 = vrot.slane %v987, %v1002
  %v1005 = vunpack.c.l.s4 1966171168
  %v1006 = vunpack.c.0.s8 %v1005
  %v1007 = vlaneseq
  %v1008 = vshrl.u32 %v1007, 7
  %v1009 = vsub.s32 %v1006, %v1008
  %v1010 = vrot.slane %v994, %v1009
  %v1012 = vunpack.c.l.s4 1966171168
  %v1013 = vunpack.c.0.s8 %v1012
  %v1014 = vlaneseq
  %v1015 = vshrl.u32 %v1014, 7
  %v1016 = vsub.s32 %v1013, %v1015
  %v1017 = vrot.slane %v995, %v1016
  %v1019 = vunpack.c.l.s4 1966171168
  %v1020 = vunpack.c.0.s8 %v1019
  %v1021 = vlaneseq
  %v1022 = vshrl.u32 %v1021, 7
  %v1023 = vsub.s32 %v1020, %v1022
  %v1024 = vrot.slane %v996, %v1023
  %v1025 = vcombine.high %v1003, %v1003
  %v1026 = vcombine.high %v1010, %v1010
  %v1027 = vcombine.high %v1017, %v1017
  %v1028 = vcombine.high %v1024, %v1024
  %1045 = vset.pattern.permute.xlu0 0
  %1046 = vperm.xlu0 %1045, %v854
  %v1047 = vpop.permute.xlu0 %1046
  %v1049 = vlaneseq
  %v1050 = vshrl.u32 %v1049, 7
  %v1051 = vsub.s32 0, %v1050
  %v1052 = vrot.slane %v1047, %v1051
  %1053 = vset.pattern.permute.xlu0 0
  %1054 = vperm.xlu0 %1053, %v868
  %v1055 = vpop.permute.xlu0 %1054
  %v1057 = vlaneseq
  %v1058 = vshrl.u32 %v1057, 7
  %v1059 = vsub.s32 0, %v1058
  %v1060 = vrot.slane %v1055, %v1059
  %1061 = vset.pattern.permute.xlu0 0
  %1062 = vperm.xlu0 %1061, %v876
  %v1063 = vpop.permute.xlu0 %1062
  %v1065 = vlaneseq
  %v1066 = vshrl.u32 %v1065, 7
  %v1067 = vsub.s32 0, %v1066
  %v1068 = vrot.slane %v1063, %v1067
  %1069 = vset.pattern.permute.xlu0 0
  %1070 = vperm.xlu0 %1069, %v878
  %v1071 = vpop.permute.xlu0 %1070
  %v1073 = vlaneseq
  %v1074 = vshrl.u32 %v1073, 7
  %v1075 = vsub.s32 0, %v1074
  %v1076 = vrot.slane %v1071, %v1075
  %1077 = vset.pattern.permute.xlu0 0
  %1078 = vperm.xlu0 %1077, %v861
  %v1079 = vpop.permute.xlu0 %1078
  %v1081 = vlaneseq
  %v1082 = vshrl.u32 %v1081, 7
  %v1083 = vsub.s32 0, %v1082
  %v1084 = vrot.slane %v1079, %v1083
  %1085 = vset.pattern.permute.xlu0 0
  %1086 = vperm.xlu0 %1085, %v875
  %v1087 = vpop.permute.xlu0 %1086
  %v1089 = vlaneseq
  %v1090 = vshrl.u32 %v1089, 7
  %v1091 = vsub.s32 0, %v1090
  %v1092 = vrot.slane %v1087, %v1091
  %1093 = vset.pattern.permute.xlu0 0
  %1094 = vperm.xlu0 %1093, %v877
  %v1095 = vpop.permute.xlu0 %1094
  %v1097 = vlaneseq
  %v1098 = vshrl.u32 %v1097, 7
  %v1099 = vsub.s32 0, %v1098
  %v1100 = vrot.slane %v1095, %v1099
  %1101 = vset.pattern.permute.xlu0 0
  %1102 = vperm.xlu0 %1101, %v879
  %v1103 = vpop.permute.xlu0 %1102
  %v1105 = vlaneseq
  %v1106 = vshrl.u32 %v1105, 7
  %v1107 = vsub.s32 0, %v1106
  %v1108 = vrot.slane %v1103, %v1107
  %1109 = vset.pattern.permute.xlu0 0
  %1110 = vperm.xlu0 %1109, %v903
  %v1111 = vpop.permute.xlu0 %1110
  %v1113 = vlaneseq
  %v1114 = vshrl.u32 %v1113, 7
  %v1115 = vsub.s32 0, %v1114
  %v1116 = vrot.slane %v1111, %v1115
  %1117 = vset.pattern.permute.xlu0 0
  %1118 = vperm.xlu0 %1117, %v917
  %v1119 = vpop.permute.xlu0 %1118
  %v1121 = vlaneseq
  %v1122 = vshrl.u32 %v1121, 7
  %v1123 = vsub.s32 0, %v1122
  %v1124 = vrot.slane %v1119, %v1123
  %1125 = vset.pattern.permute.xlu0 0
  %1126 = vperm.xlu0 %1125, %v925
  %v1127 = vpop.permute.xlu0 %1126
  %v1129 = vlaneseq
  %v1130 = vshrl.u32 %v1129, 7
  %v1131 = vsub.s32 0, %v1130
  %v1132 = vrot.slane %v1127, %v1131
  %1133 = vset.pattern.permute.xlu0 0
  %1134 = vperm.xlu0 %1133, %v927
  %v1135 = vpop.permute.xlu0 %1134
  %v1137 = vlaneseq
  %v1138 = vshrl.u32 %v1137, 7
  %v1139 = vsub.s32 0, %v1138
  %v1140 = vrot.slane %v1135, %v1139
  %1141 = vset.pattern.permute.xlu0 0
  %1142 = vperm.xlu0 %1141, %v910
  %v1143 = vpop.permute.xlu0 %1142
  %v1145 = vlaneseq
  %v1146 = vshrl.u32 %v1145, 7
  %v1147 = vsub.s32 0, %v1146
  %v1148 = vrot.slane %v1143, %v1147
  %1149 = vset.pattern.permute.xlu0 0
  %1150 = vperm.xlu0 %1149, %v924
  %v1151 = vpop.permute.xlu0 %1150
  %v1153 = vlaneseq
  %v1154 = vshrl.u32 %v1153, 7
  %v1155 = vsub.s32 0, %v1154
  %v1156 = vrot.slane %v1151, %v1155
  %1157 = vset.pattern.permute.xlu0 0
  %1158 = vperm.xlu0 %1157, %v926
  %v1159 = vpop.permute.xlu0 %1158
  %v1161 = vlaneseq
  %v1162 = vshrl.u32 %v1161, 7
  %v1163 = vsub.s32 0, %v1162
  %v1164 = vrot.slane %v1159, %v1163
  %1165 = vset.pattern.permute.xlu0 0
  %1166 = vperm.xlu0 %1165, %v928
  %v1167 = vpop.permute.xlu0 %1166
  %v1169 = vlaneseq
  %v1170 = vshrl.u32 %v1169, 7
  %v1171 = vsub.s32 0, %v1170
  %v1172 = vrot.slane %v1167, %v1171
  %v1173 = vmul.f32 %v1052, %v954
  %v1174 = vmul.f32 %v1060, %v968
  %v1175 = vmul.f32 %v1068, %v976
  %v1176 = vmul.f32 %v1076, %v978
  %v1177 = vmul.f32 %v1084, %v961
  %v1178 = vmul.f32 %v1092, %v975
  %v1179 = vmul.f32 %v1100, %v977
  %v1180 = vmul.f32 %v1108, %v979
  %v1181 = vmul.f32 %v1116, %v1003
  %v1182 = vmul.f32 %v1124, %v1017
  %v1183 = vmul.f32 %v1132, %v1025
  %v1184 = vmul.f32 %v1140, %v1027
  %v1185 = vmul.f32 %v1148, %v1010
  %v1186 = vmul.f32 %v1156, %v1024
  %v1187 = vmul.f32 %v1164, %v1026
  %v1188 = vmul.f32 %v1172, %v1028
  %vm1189 = vcmask 8192
  %v1190 = vsel %vm1189, %v1173, 0.0
  %v1191 = vsel %vm1189, %v1174, 0.0
  %v1192 = vadd.f32 %v1190, %v1191
  %v1193 = vsel %vm1189, %v1175, 0.0
  %v1194 = vadd.f32 %v1192, %v1193
  %v1195 = vsel %vm1189, %v1176, 0.0
  %v1196 = vadd.f32 %v1194, %v1195
  %v1197 = vsel %vm1189, %v1177, 0.0
  %v1198 = vadd.f32 %v1196, %v1197
  %v1199 = vsel %vm1189, %v1178, 0.0
  %v1200 = vadd.f32 %v1198, %v1199
  %v1201 = vsel %vm1189, %v1179, 0.0
  %v1202 = vadd.f32 %v1200, %v1201
  %v1203 = vsel %vm1189, %v1180, 0.0
  %v1204 = vadd.f32 %v1202, %v1203
  %v1205 = vsel %vm1189, %v1181, 0.0
  %v1206 = vadd.f32 %v1204, %v1205
  %v1207 = vsel %vm1189, %v1182, 0.0
  %v1208 = vadd.f32 %v1206, %v1207
  %v1209 = vsel %vm1189, %v1183, 0.0
  %v1210 = vadd.f32 %v1208, %v1209
  %v1211 = vsel %vm1189, %v1184, 0.0
  %v1212 = vadd.f32 %v1210, %v1211
  %v1213 = vsel %vm1189, %v1185, 0.0
  %v1214 = vadd.f32 %v1212, %v1213
  %v1215 = vsel %vm1189, %v1186, 0.0
  %v1216 = vadd.f32 %v1214, %v1215
  %v1217 = vsel %vm1189, %v1187, 0.0
  %v1218 = vadd.f32 %v1216, %v1217
  %v1219 = vsel %vm1189, %v1188, 0.0
  %v1220 = vadd.f32 %v1218, %v1219
  %v1221 = vmax.f32 %v1220, 0.0
  %v1224 = vcombine.high %v827, %v827
  %v1226 = vunpack.c.l.s4 1966171168
  %v1227 = vunpack.c.0.s8 %v1226
  %v1228 = vlaneseq
  %v1229 = vshrl.u32 %v1228, 7
  %v1230 = vsub.s32 %v1227, %v1229
  %v1231 = vrot.slane %v827, %v1230
  %v1233 = vunpack.c.l.s4 1966171168
  %v1234 = vunpack.c.0.s8 %v1233
  %v1235 = vlaneseq
  %v1236 = vshrl.u32 %v1235, 7
  %v1237 = vsub.s32 %v1234, %v1236
  %v1238 = vrot.slane %v1224, %v1237
  %v1239 = vcombine.high %v1231, %v1231
  %v1240 = vcombine.high %v1238, %v1238
  %v1242 = vunpack.c.l.s4 1966171168
  %v1243 = vunpack.c.0.s8 %v1242
  %v1244 = vlaneseq
  %v1245 = vshrl.u32 %v1244, 7
  %v1246 = vsub.s32 %v1243, %v1245
  %v1247 = vrot.slane %v1231, %v1246
  %v1249 = vunpack.c.l.s4 1966171168
  %v1250 = vunpack.c.0.s8 %v1249
  %v1251 = vlaneseq
  %v1252 = vshrl.u32 %v1251, 7
  %v1253 = vsub.s32 %v1250, %v1252
  %v1254 = vrot.slane %v1238, %v1253
  %v1256 = vunpack.c.l.s4 1966171168
  %v1257 = vunpack.c.0.s8 %v1256
  %v1258 = vlaneseq
  %v1259 = vshrl.u32 %v1258, 7
  %v1260 = vsub.s32 %v1257, %v1259
  %v1261 = vrot.slane %v1239, %v1260
  %v1263 = vunpack.c.l.s4 1966171168
  %v1264 = vunpack.c.0.s8 %v1263
  %v1265 = vlaneseq
  %v1266 = vshrl.u32 %v1265, 7
  %v1267 = vsub.s32 %v1264, %v1266
  %v1268 = vrot.slane %v1240, %v1267
  %v1269 = vcombine.high %v1247, %v1247
  %v1270 = vcombine.high %v1254, %v1254
  %v1271 = vcombine.high %v1261, %v1261
  %v1272 = vcombine.high %v1268, %v1268
  %v1273 = vcombine.high %v828, %v828
  %v1275 = vunpack.c.l.s4 1966171168
  %v1276 = vunpack.c.0.s8 %v1275
  %v1277 = vlaneseq
  %v1278 = vshrl.u32 %v1277, 7
  %v1279 = vsub.s32 %v1276, %v1278
  %v1280 = vrot.slane %v828, %v1279
  %v1282 = vunpack.c.l.s4 1966171168
  %v1283 = vunpack.c.0.s8 %v1282
  %v1284 = vlaneseq
  %v1285 = vshrl.u32 %v1284, 7
  %v1286 = vsub.s32 %v1283, %v1285
  %v1287 = vrot.slane %v1273, %v1286
  %v1288 = vcombine.high %v1280, %v1280
  %v1289 = vcombine.high %v1287, %v1287
  %v1291 = vunpack.c.l.s4 1966171168
  %v1292 = vunpack.c.0.s8 %v1291
  %v1293 = vlaneseq
  %v1294 = vshrl.u32 %v1293, 7
  %v1295 = vsub.s32 %v1292, %v1294
  %v1296 = vrot.slane %v1280, %v1295
  %v1298 = vunpack.c.l.s4 1966171168
  %v1299 = vunpack.c.0.s8 %v1298
  %v1300 = vlaneseq
  %v1301 = vshrl.u32 %v1300, 7
  %v1302 = vsub.s32 %v1299, %v1301
  %v1303 = vrot.slane %v1287, %v1302
  %v1305 = vunpack.c.l.s4 1966171168
  %v1306 = vunpack.c.0.s8 %v1305
  %v1307 = vlaneseq
  %v1308 = vshrl.u32 %v1307, 7
  %v1309 = vsub.s32 %v1306, %v1308
  %v1310 = vrot.slane %v1288, %v1309
  %v1312 = vunpack.c.l.s4 1966171168
  %v1313 = vunpack.c.0.s8 %v1312
  %v1314 = vlaneseq
  %v1315 = vshrl.u32 %v1314, 7
  %v1316 = vsub.s32 %v1313, %v1315
  %v1317 = vrot.slane %v1289, %v1316
  %v1318 = vcombine.high %v1296, %v1296
  %v1319 = vcombine.high %v1303, %v1303
  %v1320 = vcombine.high %v1310, %v1310
  %v1321 = vcombine.high %v1317, %v1317
  %1322 = vset.pattern.permute.xlu0 0
  %1323 = vperm.xlu0 %1322, %v1247
  %v1324 = vpop.permute.xlu0 %1323
  %v1326 = vlaneseq
  %v1327 = vshrl.u32 %v1326, 7
  %v1328 = vsub.s32 0, %v1327
  %v1329 = vrot.slane %v1324, %v1328
  %1330 = vset.pattern.permute.xlu0 0
  %1331 = vperm.xlu0 %1330, %v1261
  %v1332 = vpop.permute.xlu0 %1331
  %v1334 = vlaneseq
  %v1335 = vshrl.u32 %v1334, 7
  %v1336 = vsub.s32 0, %v1335
  %v1337 = vrot.slane %v1332, %v1336
  %1338 = vset.pattern.permute.xlu0 0
  %1339 = vperm.xlu0 %1338, %v1269
  %v1340 = vpop.permute.xlu0 %1339
  %v1342 = vlaneseq
  %v1343 = vshrl.u32 %v1342, 7
  %v1344 = vsub.s32 0, %v1343
  %v1345 = vrot.slane %v1340, %v1344
  %1346 = vset.pattern.permute.xlu0 0
  %1347 = vperm.xlu0 %1346, %v1271
  %v1348 = vpop.permute.xlu0 %1347
  %v1350 = vlaneseq
  %v1351 = vshrl.u32 %v1350, 7
  %v1352 = vsub.s32 0, %v1351
  %v1353 = vrot.slane %v1348, %v1352
  %1354 = vset.pattern.permute.xlu0 0
  %1355 = vperm.xlu0 %1354, %v1254
  %v1356 = vpop.permute.xlu0 %1355
  %v1358 = vlaneseq
  %v1359 = vshrl.u32 %v1358, 7
  %v1360 = vsub.s32 0, %v1359
  %v1361 = vrot.slane %v1356, %v1360
  %1362 = vset.pattern.permute.xlu0 0
  %1363 = vperm.xlu0 %1362, %v1268
  %v1364 = vpop.permute.xlu0 %1363
  %v1366 = vlaneseq
  %v1367 = vshrl.u32 %v1366, 7
  %v1368 = vsub.s32 0, %v1367
  %v1369 = vrot.slane %v1364, %v1368
  %1370 = vset.pattern.permute.xlu0 0
  %1371 = vperm.xlu0 %1370, %v1270
  %v1372 = vpop.permute.xlu0 %1371
  %v1374 = vlaneseq
  %v1375 = vshrl.u32 %v1374, 7
  %v1376 = vsub.s32 0, %v1375
  %v1377 = vrot.slane %v1372, %v1376
  %1378 = vset.pattern.permute.xlu0 0
  %1379 = vperm.xlu0 %1378, %v1272
  %v1380 = vpop.permute.xlu0 %1379
  %v1382 = vlaneseq
  %v1383 = vshrl.u32 %v1382, 7
  %v1384 = vsub.s32 0, %v1383
  %v1385 = vrot.slane %v1380, %v1384
  %1386 = vset.pattern.permute.xlu0 0
  %1387 = vperm.xlu0 %1386, %v1296
  %v1388 = vpop.permute.xlu0 %1387
  %v1390 = vlaneseq
  %v1391 = vshrl.u32 %v1390, 7
  %v1392 = vsub.s32 0, %v1391
  %v1393 = vrot.slane %v1388, %v1392
  %1394 = vset.pattern.permute.xlu0 0
  %1395 = vperm.xlu0 %1394, %v1310
  %v1396 = vpop.permute.xlu0 %1395
  %v1398 = vlaneseq
  %v1399 = vshrl.u32 %v1398, 7
  %v1400 = vsub.s32 0, %v1399
  %v1401 = vrot.slane %v1396, %v1400
  %1402 = vset.pattern.permute.xlu0 0
  %1403 = vperm.xlu0 %1402, %v1318
  %v1404 = vpop.permute.xlu0 %1403
  %v1406 = vlaneseq
  %v1407 = vshrl.u32 %v1406, 7
  %v1408 = vsub.s32 0, %v1407
  %v1409 = vrot.slane %v1404, %v1408
  %1410 = vset.pattern.permute.xlu0 0
  %1411 = vperm.xlu0 %1410, %v1320
  %v1412 = vpop.permute.xlu0 %1411
  %v1414 = vlaneseq
  %v1415 = vshrl.u32 %v1414, 7
  %v1416 = vsub.s32 0, %v1415
  %v1417 = vrot.slane %v1412, %v1416
  %1418 = vset.pattern.permute.xlu0 0
  %1419 = vperm.xlu0 %1418, %v1303
  %v1420 = vpop.permute.xlu0 %1419
  %v1422 = vlaneseq
  %v1423 = vshrl.u32 %v1422, 7
  %v1424 = vsub.s32 0, %v1423
  %v1425 = vrot.slane %v1420, %v1424
  %1426 = vset.pattern.permute.xlu0 0
  %1427 = vperm.xlu0 %1426, %v1317
  %v1428 = vpop.permute.xlu0 %1427
  %v1430 = vlaneseq
  %v1431 = vshrl.u32 %v1430, 7
  %v1432 = vsub.s32 0, %v1431
  %v1433 = vrot.slane %v1428, %v1432
  %1434 = vset.pattern.permute.xlu0 0
  %1435 = vperm.xlu0 %1434, %v1319
  %v1436 = vpop.permute.xlu0 %1435
  %v1438 = vlaneseq
  %v1439 = vshrl.u32 %v1438, 7
  %v1440 = vsub.s32 0, %v1439
  %v1441 = vrot.slane %v1436, %v1440
  %1442 = vset.pattern.permute.xlu0 0
  %1443 = vperm.xlu0 %1442, %v1321
  %v1444 = vpop.permute.xlu0 %1443
  %v1446 = vlaneseq
  %v1447 = vshrl.u32 %v1446, 7
  %v1448 = vsub.s32 0, %v1447
  %v1449 = vrot.slane %v1444, %v1448
  %v1450 = vmul.f32 %v1329, %v1221
  %v1451 = vmul.f32 %v1337, %v1221
  %v1452 = vmul.f32 %v1345, %v1221
  %v1453 = vmul.f32 %v1353, %v1221
  %v1454 = vmul.f32 %v1361, %v1221
  %v1455 = vmul.f32 %v1369, %v1221
  %v1456 = vmul.f32 %v1377, %v1221
  %v1457 = vmul.f32 %v1385, %v1221
  %v1458 = vmul.f32 %v1393, %v1221
  %v1459 = vmul.f32 %v1401, %v1221
  %v1460 = vmul.f32 %v1409, %v1221
  %v1461 = vmul.f32 %v1417, %v1221
  %v1462 = vmul.f32 %v1425, %v1221
  %v1463 = vmul.f32 %v1433, %v1221
  %v1464 = vmul.f32 %v1441, %v1221
  %v1465 = vmul.f32 %v1449, %v1221
  %v1466 = vadd.f32 %v1450, 0.0
  %v1467 = vadd.f32 %v1451, 0.0
  %v1468 = vadd.f32 %v1452, 0.0
  %v1469 = vadd.f32 %v1453, 0.0
  %v1470 = vadd.f32 %v1454, 0.0
  %v1471 = vadd.f32 %v1455, 0.0
  %v1472 = vadd.f32 %v1456, 0.0
  %v1473 = vadd.f32 %v1457, 0.0
  %v1474 = vadd.f32 %v1458, 0.0
  %v1475 = vadd.f32 %v1459, 0.0
  %v1476 = vadd.f32 %v1460, 0.0
  %v1477 = vadd.f32 %v1461, 0.0
  %v1478 = vadd.f32 %v1462, 0.0
  %v1479 = vadd.f32 %v1463, 0.0
  %v1480 = vadd.f32 %v1464, 0.0
  %v1481 = vadd.f32 %v1465, 0.0
  %v1482 = vxor.u32 %v1466, 2147483648
  %v1483 = vxor.u32 %v1467, 2147483648
  %v1484 = vxor.u32 %v1468, 2147483648
  %v1485 = vxor.u32 %v1469, 2147483648
  %v1486 = vxor.u32 %v1470, 2147483648
  %v1487 = vxor.u32 %v1471, 2147483648
  %v1488 = vxor.u32 %v1472, 2147483648
  %v1489 = vxor.u32 %v1473, 2147483648
  %v1490 = vxor.u32 %v1474, 2147483648
  %v1491 = vxor.u32 %v1475, 2147483648
  %v1492 = vxor.u32 %v1476, 2147483648
  %v1493 = vxor.u32 %v1477, 2147483648
  %v1494 = vxor.u32 %v1478, 2147483648
  %v1495 = vxor.u32 %v1479, 2147483648
  %v1496 = vxor.u32 %v1480, 2147483648
  %v1497 = vxor.u32 %v1481, 2147483648
  %v1498 = vmul.f32 %v1482, 1.442695
  %v1499 = vpow.pop %v1498
  %v1500 = vmul.f32 %v1483, 1.442695
  %v1501 = vpow.pop %v1500
  %v1502 = vmul.f32 %v1484, 1.442695
  %v1503 = vpow.pop %v1502
  %v1504 = vmul.f32 %v1485, 1.442695
  %v1505 = vpow.pop %v1504
  %v1506 = vmul.f32 %v1486, 1.442695
  %v1507 = vpow.pop %v1506
  %v1508 = vmul.f32 %v1487, 1.442695
  %v1509 = vpow.pop %v1508
  %v1510 = vmul.f32 %v1488, 1.442695
  %v1511 = vpow.pop %v1510
  %v1512 = vmul.f32 %v1489, 1.442695
  %v1513 = vpow.pop %v1512
  %v1514 = vmul.f32 %v1490, 1.442695
  %v1515 = vpow.pop %v1514
  %v1516 = vmul.f32 %v1491, 1.442695
  %v1517 = vpow.pop %v1516
  %v1518 = vmul.f32 %v1492, 1.442695
  %v1519 = vpow.pop %v1518
  %v1520 = vmul.f32 %v1493, 1.442695
  %v1521 = vpow.pop %v1520
  %v1522 = vmul.f32 %v1494, 1.442695
  %v1523 = vpow.pop %v1522
  %v1524 = vmul.f32 %v1495, 1.442695
  %v1525 = vpow.pop %v1524
  %v1526 = vmul.f32 %v1496, 1.442695
  %v1527 = vpow.pop %v1526
  %v1528 = vmul.f32 %v1497, 1.442695
  %v1529 = vpow.pop %v1528
  %v1530 = vadd.f32 %v1499, 1.0
  %v1531 = vadd.f32 %v1501, 1.0
  %v1532 = vadd.f32 %v1503, 1.0
  %v1533 = vadd.f32 %v1505, 1.0
  %v1534 = vadd.f32 %v1507, 1.0
  %v1535 = vadd.f32 %v1509, 1.0
  %v1536 = vadd.f32 %v1511, 1.0
  %v1537 = vadd.f32 %v1513, 1.0
  %v1538 = vadd.f32 %v1515, 1.0
  %v1539 = vadd.f32 %v1517, 1.0
  %v1540 = vadd.f32 %v1519, 1.0
  %v1541 = vadd.f32 %v1521, 1.0
  %v1542 = vadd.f32 %v1523, 1.0
  %v1543 = vadd.f32 %v1525, 1.0
  %v1544 = vadd.f32 %v1527, 1.0
  %v1545 = vadd.f32 %v1529, 1.0
  %v1546 = vrcp.pop %v1530
  %v1547 = vmul.f32 1.0, %v1546
  %v1548 = vrcp.pop %v1531
  %v1549 = vmul.f32 1.0, %v1548
  %v1550 = vrcp.pop %v1532
  %v1551 = vmul.f32 1.0, %v1550
  %v1552 = vrcp.pop %v1533
  %v1553 = vmul.f32 1.0, %v1552
  %v1554 = vrcp.pop %v1534
  %v1555 = vmul.f32 1.0, %v1554
  %v1556 = vrcp.pop %v1535
  %v1557 = vmul.f32 1.0, %v1556
  %v1558 = vrcp.pop %v1536
  %v1559 = vmul.f32 1.0, %v1558
  %v1560 = vrcp.pop %v1537
  %v1561 = vmul.f32 1.0, %v1560
  %v1562 = vrcp.pop %v1538
  %v1563 = vmul.f32 1.0, %v1562
  %v1564 = vrcp.pop %v1539
  %v1565 = vmul.f32 1.0, %v1564
  %v1566 = vrcp.pop %v1540
  %v1567 = vmul.f32 1.0, %v1566
  %v1568 = vrcp.pop %v1541
  %v1569 = vmul.f32 1.0, %v1568
  %v1570 = vrcp.pop %v1542
  %v1571 = vmul.f32 1.0, %v1570
  %v1572 = vrcp.pop %v1543
  %v1573 = vmul.f32 1.0, %v1572
  %v1574 = vrcp.pop %v1544
  %v1575 = vmul.f32 1.0, %v1574
  %v1576 = vrcp.pop %v1545
  %v1577 = vmul.f32 1.0, %v1576
  %v1578 = vld [vmem:[%s7] sm:$0xff]
  %v1595 = vrot.slane %v1549, 7
  %vm1596 = vcmask 1041409
  %v1597 = vsel %vm1596, %v1595, %v1547
  %v1598 = vrot.slane %v1551, 6
  %vm1599 = vcmask 1042434
  %v1600 = vsel %vm1599, %v1598, %v1597
  %v1601 = vrot.slane %v1553, 5
  %vm1602 = vcmask 1043459
  %v1603 = vsel %vm1602, %v1601, %v1600
  %v1604 = vrot.slane %v1555, 4
  %vm1605 = vcmask 1044484
  %v1606 = vsel %vm1605, %v1604, %v1603
  %v1607 = vrot.slane %v1557, 3
  %vm1608 = vcmask 1045509
  %v1609 = vsel %vm1608, %v1607, %v1606
  %v1610 = vrot.slane %v1559, 2
  %vm1611 = vcmask 1046534
  %v1612 = vsel %vm1611, %v1610, %v1609
  %v1613 = vrot.slane %v1561, 1
  %vm1614 = vcmask 1047559
  %v1615 = vsel %vm1614, %v1613, %v1612
  %v1616 = vrot.slane %v1565, 7
  %v1617 = vsel %vm1596, %v1616, %v1563
  %v1618 = vrot.slane %v1567, 6
  %v1619 = vsel %vm1599, %v1618, %v1617
  %v1620 = vrot.slane %v1569, 5
  %v1621 = vsel %vm1602, %v1620, %v1619
  %v1622 = vrot.slane %v1571, 4
  %v1623 = vsel %vm1605, %v1622, %v1621
  %v1624 = vrot.slane %v1573, 3
  %v1625 = vsel %vm1608, %v1624, %v1623
  %v1626 = vrot.slane %v1575, 2
  %v1627 = vsel %vm1611, %v1626, %v1625
  %v1628 = vrot.slane %v1577, 1
  %v1629 = vsel %vm1614, %v1628, %v1627
  %v1631 = vcombine.high %v1578, %v1578
  %v1633 = vunpack.c.l.s4 1983009808
  %v1634 = vunpack.c.0.s8 %v1633
  %v1635 = vlaneseq
  %v1636 = vshrl.u32 %v1635, 7
  %v1637 = vsub.s32 %v1634, %v1636
  %v1638 = vrot.slane %v1578, %v1637
  %v1640 = vunpack.c.l.s4 1983009808
  %v1641 = vunpack.c.0.s8 %v1640
  %v1642 = vlaneseq
  %v1643 = vshrl.u32 %v1642, 7
  %v1644 = vsub.s32 %v1641, %v1643
  %v1645 = vrot.slane %v1631, %v1644
  %v1646 = vcombine.high %v1638, %v1638
  %v1647 = vcombine.high %v1645, %v1645
  %vm1648 = vcmask 15360
  %v1649 = vsel %vm1648, %v1615, 0
  %v1651 = vsel %vm1648, %v1629, 0
  %vm1653 = vcmask 1041408
  %v1654 = vsel %vm1653, %v1638, 0
  %v1656 = vsel %vm1653, %v1646, 0
  %v1658 = vsel %vm1653, %v1645, 0
  %v1660 = vsel %vm1653, %v1647, 0
  %1662 = vmatprep.subr.mxu0 0.0
  %1663 = vmatpush1.msra.mxu0 0.0
  %1664 = vmatprep.subr.mxu0 0.0
  %1665 = vmatpush1.msra.mxu0 0.0
  %1666 = vmatprep.subr.mxu0 0.0
  %1667 = vmatpush1.msra.mxu0 0.0
  %1668 = vmatprep.subr.mxu0 0.0
  %1669 = vmatpush1.msra.mxu0 0.0
  %1670 = vmatprep.subr.mxu0 0.0
  %1671 = vmatpush1.msra.mxu0 0.0
  %1672 = vmatprep.subr.mxu0 0.0
  %1673 = vmatpush1.msra.mxu0 0.0
  %1674 = vmatprep.subr.mxu0 0.0
  %1675 = vmatpush1.msra.mxu0 0.0
  %1676 = vmatprep.subr.mxu0 0.0
  %1677 = vmatpush1.msra.mxu0 0.0
  %1678 = vmatprep.subr.mxu0 0.0
  %1679 = vmatpush1.msra.mxu0 0.0
  %1680 = vmatprep.subr.mxu0 0.0
  %1681 = vmatpush1.msra.mxu0 0.0
  %1682 = vmatprep.subr.mxu0 0.0
  %1683 = vmatpush1.msra.mxu0 0.0
  %1684 = vmatprep.subr.mxu0 0.0
  %1685 = vmatpush1.msra.mxu0 0.0
  %1686 = vmatprep.subr.mxu0 0.0
  %1687 = vmatpush1.msra.mxu0 0.0
  %1688 = vmatprep.subr.mxu0 0.0
  %1689 = vmatpush1.msra.mxu0 0.0
  %1690 = vmatprep.subr.mxu0 0.0
  %1691 = vmatpush1.msra.mxu0 0.0
  %1692 = vmatprep.subr.mxu0 %v1656
  %1693 = vmatpush1.msra.mxu0 %v1654
  %1694 = vmatprep.subr.mxu0 0.0
  %1695 = vmatpush2.msra.mxu0 0.0
  %1696 = vmatprep.subr.mxu0 0.0
  %1697 = vmatpush2.msra.mxu0 0.0
  %1698 = vmatprep.subr.mxu0 0.0
  %1699 = vmatpush2.msra.mxu0 0.0
  %1700 = vmatprep.subr.mxu0 0.0
  %1701 = vmatpush2.msra.mxu0 0.0
  %1702 = vmatprep.subr.mxu0 0.0
  %1703 = vmatpush2.msra.mxu0 0.0
  %1704 = vmatprep.subr.mxu0 0.0
  %1705 = vmatpush2.msra.mxu0 0.0
  %1706 = vmatprep.subr.mxu0 0.0
  %1707 = vmatpush2.msra.mxu0 0.0
  %1708 = vmatprep.subr.mxu0 0.0
  %1709 = vmatpush2.msra.mxu0 0.0
  %1710 = vmatprep.subr.mxu0 0.0
  %1711 = vmatpush2.msra.mxu0 0.0
  %1712 = vmatprep.subr.mxu0 0.0
  %1713 = vmatpush2.msra.mxu0 0.0
  %1714 = vmatprep.subr.mxu0 0.0
  %1715 = vmatpush2.msra.mxu0 0.0
  %1716 = vmatprep.subr.mxu0 0.0
  %1717 = vmatpush2.msra.mxu0 0.0
  %1718 = vmatprep.subr.mxu0 0.0
  %1719 = vmatpush2.msra.mxu0 0.0
  %1720 = vmatprep.subr.mxu0 0.0
  %1721 = vmatpush2.msra.mxu0 0.0
  %1722 = vmatprep.subr.mxu0 0.0
  %1723 = vmatpush2.msra.mxu0 0.0
  %1724 = vmatprep.subr.mxu0 0.0
  %1725 = vmatpush2.msra.mxu0 0.0
  %1726 = vmatprep.mubr.f32.mxu0 0.0
  %1727 = vmatmul.mubr.f32.gmra.mxu0 %v1649
  %v1728 = vpop.f32.mrf.mxu0
  %v1729 = vadd.f32 1.0, %v1728
  %v1730 = vpop.f32.mrf.mxu0
  %v1731 = vadd.f32 1.0, %v1730
  %1732 = vmatprep.mubr.f32.mxu0 0.0
  %1733 = vmatmul.mubr.f32.gmra.mxu0 %v1651
  %v1734 = vpop.f32.mrf.mxu0
  %v1735 = vadd.f32 1.0, %v1734
  %v1736 = vpop.f32.mrf.mxu0
  %v1737 = vadd.f32 1.0, %v1736
  %1738 = vdwg.mxu0
  %1739 = vmatprep.subr.mxu0 0.0
  %1740 = vmatpush1.msra.mxu0 0.0
  %1741 = vmatprep.subr.mxu0 0.0
  %1742 = vmatpush1.msra.mxu0 0.0
  %1743 = vmatprep.subr.mxu0 0.0
  %1744 = vmatpush1.msra.mxu0 0.0
  %1745 = vmatprep.subr.mxu0 0.0
  %1746 = vmatpush1.msra.mxu0 0.0
  %1747 = vmatprep.subr.mxu0 0.0
  %1748 = vmatpush1.msra.mxu0 0.0
  %1749 = vmatprep.subr.mxu0 0.0
  %1750 = vmatpush1.msra.mxu0 0.0
  %1751 = vmatprep.subr.mxu0 0.0
  %1752 = vmatpush1.msra.mxu0 0.0
  %1753 = vmatprep.subr.mxu0 0.0
  %1754 = vmatpush1.msra.mxu0 0.0
  %1755 = vmatprep.subr.mxu0 0.0
  %1756 = vmatpush1.msra.mxu0 0.0
  %1757 = vmatprep.subr.mxu0 0.0
  %1758 = vmatpush1.msra.mxu0 0.0
  %1759 = vmatprep.subr.mxu0 0.0
  %1760 = vmatpush1.msra.mxu0 0.0
  %1761 = vmatprep.subr.mxu0 0.0
  %1762 = vmatpush1.msra.mxu0 0.0
  %1763 = vmatprep.subr.mxu0 0.0
  %1764 = vmatpush1.msra.mxu0 0.0
  %1765 = vmatprep.subr.mxu0 0.0
  %1766 = vmatpush1.msra.mxu0 0.0
  %1767 = vmatprep.subr.mxu0 0.0
  %1768 = vmatpush1.msra.mxu0 0.0
  %1769 = vmatprep.subr.mxu0 %v1660
  %1770 = vmatpush1.msra.mxu0 %v1658
  %1771 = vmatprep.subr.mxu0 0.0
  %1772 = vmatpush2.msra.mxu0 0.0
  %1773 = vmatprep.subr.mxu0 0.0
  %1774 = vmatpush2.msra.mxu0 0.0
  %1775 = vmatprep.subr.mxu0 0.0
  %1776 = vmatpush2.msra.mxu0 0.0
  %1777 = vmatprep.subr.mxu0 0.0
  %1778 = vmatpush2.msra.mxu0 0.0
  %1779 = vmatprep.subr.mxu0 0.0
  %1780 = vmatpush2.msra.mxu0 0.0
  %1781 = vmatprep.subr.mxu0 0.0
  %1782 = vmatpush2.msra.mxu0 0.0
  %1783 = vmatprep.subr.mxu0 0.0
  %1784 = vmatpush2.msra.mxu0 0.0
  %1785 = vmatprep.subr.mxu0 0.0
  %1786 = vmatpush2.msra.mxu0 0.0
  %1787 = vmatprep.subr.mxu0 0.0
  %1788 = vmatpush2.msra.mxu0 0.0
  %1789 = vmatprep.subr.mxu0 0.0
  %1790 = vmatpush2.msra.mxu0 0.0
  %1791 = vmatprep.subr.mxu0 0.0
  %1792 = vmatpush2.msra.mxu0 0.0
  %1793 = vmatprep.subr.mxu0 0.0
  %1794 = vmatpush2.msra.mxu0 0.0
  %1795 = vmatprep.subr.mxu0 0.0
  %1796 = vmatpush2.msra.mxu0 0.0
  %1797 = vmatprep.subr.mxu0 0.0
  %1798 = vmatpush2.msra.mxu0 0.0
  %1799 = vmatprep.subr.mxu0 0.0
  %1800 = vmatpush2.msra.mxu0 0.0
  %1801 = vmatprep.subr.mxu0 0.0
  %1802 = vmatpush2.msra.mxu0 0.0
  %1803 = vmatprep.mubr.f32.mxu0 0.0
  %1804 = vmatmul.mubr.f32.gmra.mxu0 %v1649
  %v1805 = vpop.f32.mrf.mxu0
  %v1806 = vadd.f32 1.0, %v1805
  %v1807 = vpop.f32.mrf.mxu0
  %v1808 = vadd.f32 1.0, %v1807
  %1809 = vmatprep.mubr.f32.mxu0 0.0
  %1810 = vmatmul.mubr.f32.gmra.mxu0 %v1651
  %v1811 = vpop.f32.mrf.mxu0
  %v1812 = vadd.f32 1.0, %v1811
  %v1813 = vpop.f32.mrf.mxu0
  %v1814 = vadd.f32 1.0, %v1813
  %1815 = vdwg.mxu0
  %v1816 = vmul.f32 %v595, %v1729
  %v1817 = vmul.f32 %v596, %v1731
  %v1818 = vmul.f32 %v597, %v1806
  %v1819 = vmul.f32 %v598, %v1808
  %v1820 = vmul.f32 %v599, %v1735
  %v1821 = vmul.f32 %v600, %v1737
  %v1822 = vmul.f32 %v601, %v1812
  %v1823 = vmul.f32 %v602, %v1814
  %v1824 = vmax.f32 %v1816, 0.0
  %v1825 = vmax.f32 %v1817, 0.0
  %v1826 = vmax.f32 %v1818, 0.0
  %v1827 = vmax.f32 %v1819, 0.0
  %v1828 = vmax.f32 %v1820, 0.0
  %v1829 = vmax.f32 %v1821, 0.0
  %v1830 = vmax.f32 %v1822, 0.0
  %v1831 = vmax.f32 %v1823, 0.0
  %v1832 = vpack.c.bf16 %v1828, %v1824
  %v1833 = vpack.c.bf16 %v1829, %v1825
  %v1834 = vpack.c.bf16 %v1830, %v1826
  %v1835 = vpack.c.bf16 %v1831, %v1827
  %v1840 = vunpack.c.l.b16 %v1832
  %v1841 = vunpack.c.l.b16 %v1833
  %v1842 = vunpack.c.l.b16 %v1834
  %v1843 = vunpack.c.l.b16 %v1835
  %v1844 = vunpack.c.h.b16 %v1832
  %v1845 = vunpack.c.h.b16 %v1833
  %v1846 = vunpack.c.h.b16 %v1834
  %v1847 = vunpack.c.h.b16 %v1835
  %v1848 = vpack.c.b16 %v1841, %v1840
  %v1849 = vpack.c.b16 %v1843, %v1842
  %v1850 = vpack.c.b16 %v1845, %v1844
  %v1851 = vpack.c.b16 %v1847, %v1846
  %1856 = vst [vmem:[%s8] sm:$0xff] %v1848
  %1857 = vst [vmem:[%s8 + $0x8] sm:$0xff] %v1849
  %1858 = vst [vmem:[%s8 + $0x10] sm:$0xff] %v1850
  %1859 = vst [vmem:[%s8 + $0x18] sm:$0xff] %v1851
  // Predicated region
  $region34: #{a_call__.4} parent=0 // pred_check
    _
  $region35: #{a_call__.4} parent=0 // pred_check_branch
    %1861 = sbr.rel (0) target = $region37
  $region36: #{a_call__.4} parent=0 // pred_region
    _
  $region37: #{a_call__.4} parent=0 // pred_fallthru
    _
  // Predicated region
  $region38: #{a_call__.4} parent=0 // pred_check
    _
  $region39: #{a_call__.4} parent=0 // pred_check_branch
    %1863 = sbr.rel (0) target = $region41
  $region40: #{a_call__.4} parent=0 // pred_region
    _
  $region41: #{a_call__.4} parent=0 // pred_fallthru
    _
  // Predicated region
  $region42: #{a_call__.4} parent=0 // pred_check
    _
  $region43: #{a_call__.4} parent=0 // pred_check_branch
    %1865 = sbr.rel (0) target = $region45
  $region44: #{a_call__.4} parent=0 // pred_region
    _
  $region45: #{a_call__.4} parent=0 // pred_fallthru
    _
  // Predicated region
  $region46: #{a_call__.4} parent=0 // pred_check
    _
  $region47: #{a_call__.4} parent=0 // pred_check_branch
    %1867 = sbr.rel (0) target = $region49
  $region48: #{a_call__.4} parent=0 // pred_region
    _
  $region49: #{a_call__.4} parent=0 // pred_fallthru
    _

// kernel: a_call__.5
$region0: #{a_call__.5}
  #allocation0 [shape = 'u32[]', space=smem, size = 0x4, offset = 0x4, fixed_abs, tag = 'smem constant byte address 0x4 - core index']
  #allocation1 [shape = 'u32[144,128]{1,0:T(1,128)}', space=vmem, size = 0x12000, scoped, tag = 'internal scratch']
  %s0 = inlined_call_operand.vmem [shape: bf16[144,512], index: 0, kind: input, shape index: {}]
  %s1 = inlined_call_operand.vmem [shape: bf16[16,144], index: 1, kind: input, shape index: {}]
  %s2 = inlined_call_operand.vmem [shape: f32[16,1], index: 2, kind: input, shape index: {}]
  %s3 = inlined_call_operand.vmem [shape: f32[16,1], index: 3, kind: input, shape index: {}]
  %s4 = inlined_call_operand.vmem [shape: f32[16,512], index: 4, kind: input, shape index: {}]
  %s5 = inlined_call_operand.vmem [shape: f32[32,512], index: 5, kind: output, shape index: {}]
  %s6 = sld [smem:[#allocation0]]
  $region30: #{a_call__.5} parent=0
    _
  %s8 = ssub.s32 1, %s6
  %s9 = scalar_select 0, %s8, %s6
  // Predicated region
  $region2: #{a_call__.5} parent=0 // pred_check
    _
  $region3: #{a_call__.5} parent=0 // pred_check_branch
    %11 = sbr.rel (0) target = $region5
  $region4: #{a_call__.5} parent=0 // pred_region
    _
  $region5: #{a_call__.5} parent=0 // pred_fallthru
    _
  // Predicated region
  $region6: #{a_call__.5} parent=0 // pred_check
    _
  $region7: #{a_call__.5} parent=0 // pred_check_branch
    %13 = sbr.rel (0) target = $region9
  $region8: #{a_call__.5} parent=0 // pred_region
    _
  $region9: #{a_call__.5} parent=0 // pred_fallthru
    _
  // Predicated region
  $region10: #{a_call__.5} parent=0 // pred_check
    _
  $region11: #{a_call__.5} parent=0 // pred_check_branch
    %15 = sbr.rel (0) target = $region13
  $region12: #{a_call__.5} parent=0 // pred_region
    _
  $region13: #{a_call__.5} parent=0 // pred_fallthru
    _
  // Predicated region
  $region14: #{a_call__.5} parent=0 // pred_check
    _
  $region15: #{a_call__.5} parent=0 // pred_check_branch
    %17 = sbr.rel (0) target = $region17
  $region16: #{a_call__.5} parent=0 // pred_region
    _
  $region17: #{a_call__.5} parent=0 // pred_fallthru
    _
  // Predicated region
  $region18: #{a_call__.5} parent=0 // pred_check
    _
  $region19: #{a_call__.5} parent=0 // pred_check_branch
    %19 = sbr.rel (0) target = $region21
  $region20: #{a_call__.5} parent=0 // pred_region
    _
  $region21: #{a_call__.5} parent=0 // pred_fallthru
    _
  %v21 = vld [vmem:[%s1] sm:$0xff]
  %v22 = vld [vmem:[%s1 + $0x8] sm:$0xff]
  %v23 = vld [vmem:[%s0] sm:$0xff]
  %v24 = vld [vmem:[%s0 + $0x8] sm:$0xff]
  %v25 = vld [vmem:[%s0 + $0x10] sm:$0xff]
  %v26 = vld [vmem:[%s0 + $0x18] sm:$0xff]
  %v27 = vld [vmem:[%s0 + $0x20] sm:$0xff]
  %v28 = vld [vmem:[%s0 + $0x28] sm:$0xff]
  %v29 = vld [vmem:[%s0 + $0x30] sm:$0xff]
  %v30 = vld [vmem:[%s0 + $0x38] sm:$0xff]
  %v31 = vld [vmem:[%s0 + $0x40] sm:$0xff]
  %v32 = vld [vmem:[%s0 + $0x48] sm:$0xff]
  %v33 = vld [vmem:[%s0 + $0x50] sm:$0xff]
  %v34 = vld [vmem:[%s0 + $0x58] sm:$0xff]
  %v35 = vld [vmem:[%s0 + $0x60] sm:$0xff]
  %v36 = vld [vmem:[%s0 + $0x68] sm:$0xff]
  %v37 = vld [vmem:[%s0 + $0x70] sm:$0xff]
  %v38 = vld [vmem:[%s0 + $0x78] sm:$0xff]
  %v39 = vld [vmem:[%s0 + $0x80] sm:$0xff]
  %v40 = vld [vmem:[%s0 + $0x88] sm:$0xff]
  %v41 = vld [vmem:[%s0 + $0x90] sm:$0xff]
  %v42 = vld [vmem:[%s0 + $0x98] sm:$0xff]
  %v43 = vld [vmem:[%s0 + $0xa0] sm:$0xff]
  %v44 = vld [vmem:[%s0 + $0xa8] sm:$0xff]
  %v45 = vld [vmem:[%s0 + $0xb0] sm:$0xff]
  %v46 = vld [vmem:[%s0 + $0xb8] sm:$0xff]
  %v47 = vld [vmem:[%s0 + $0xc0] sm:$0xff]
  %v48 = vld [vmem:[%s0 + $0xc8] sm:$0xff]
  %v49 = vld [vmem:[%s0 + $0xd0] sm:$0xff]
  %v50 = vld [vmem:[%s0 + $0xd8] sm:$0xff]
  %v51 = vld [vmem:[%s0 + $0xe0] sm:$0xff]
  %v52 = vld [vmem:[%s0 + $0xe8] sm:$0xff]
  %v53 = vld [vmem:[%s0 + $0xf0] sm:$0xff]
  %v54 = vld [vmem:[%s0 + $0xf8] sm:$0xff]
  %v55 = vld [vmem:[%s0 + $0x100] sm:$0xff]
  %v56 = vld [vmem:[%s0 + $0x108] sm:$0xff]
  %v57 = vld [vmem:[%s0 + $0x110] sm:$0xff]
  %v58 = vld [vmem:[%s0 + $0x118] sm:$0xff]
  %v61 = vunpack.c.l.b16 %v21
  %v62 = vunpack.c.h.b16 %v21
  %v63 = vunpack.c.l.b16 %v22
  %v64 = vunpack.c.h.b16 %v22
  %v65 = vpack.c.b16 %v63, %v61
  %v66 = vpack.c.b16 %v64, %v62
  %v104 = vunpack.c.l.b16 %v23
  %v105 = vunpack.c.h.b16 %v23
  %v106 = vunpack.c.l.b16 %v24
  %v107 = vunpack.c.h.b16 %v24
  %v108 = vunpack.c.l.b16 %v25
  %v109 = vunpack.c.h.b16 %v25
  %v110 = vunpack.c.l.b16 %v26
  %v111 = vunpack.c.h.b16 %v26
  %v112 = vunpack.c.l.b16 %v27
  %v113 = vunpack.c.h.b16 %v27
  %v114 = vunpack.c.l.b16 %v28
  %v115 = vunpack.c.h.b16 %v28
  %v116 = vunpack.c.l.b16 %v29
  %v117 = vunpack.c.h.b16 %v29
  %v118 = vunpack.c.l.b16 %v30
  %v119 = vunpack.c.h.b16 %v30
  %v120 = vunpack.c.l.b16 %v31
  %v121 = vunpack.c.h.b16 %v31
  %v122 = vunpack.c.l.b16 %v32
  %v123 = vunpack.c.h.b16 %v32
  %v124 = vunpack.c.l.b16 %v33
  %v125 = vunpack.c.h.b16 %v33
  %v126 = vunpack.c.l.b16 %v34
  %v127 = vunpack.c.h.b16 %v34
  %v128 = vunpack.c.l.b16 %v35
  %v129 = vunpack.c.h.b16 %v35
  %v130 = vunpack.c.l.b16 %v36
  %v131 = vunpack.c.h.b16 %v36
  %v132 = vunpack.c.l.b16 %v37
  %v133 = vunpack.c.h.b16 %v37
  %v134 = vunpack.c.l.b16 %v38
  %v135 = vunpack.c.h.b16 %v38
  %v136 = vunpack.c.l.b16 %v39
  %v137 = vunpack.c.h.b16 %v39
  %v138 = vunpack.c.l.b16 %v40
  %v139 = vunpack.c.h.b16 %v40
  %v140 = vunpack.c.l.b16 %v41
  %v141 = vunpack.c.h.b16 %v41
  %v142 = vunpack.c.l.b16 %v42
  %v143 = vunpack.c.h.b16 %v42
  %v144 = vunpack.c.l.b16 %v43
  %v145 = vunpack.c.h.b16 %v43
  %v146 = vunpack.c.l.b16 %v44
  %v147 = vunpack.c.h.b16 %v44
  %v148 = vunpack.c.l.b16 %v45
  %v149 = vunpack.c.h.b16 %v45
  %v150 = vunpack.c.l.b16 %v46
  %v151 = vunpack.c.h.b16 %v46
  %v152 = vunpack.c.l.b16 %v47
  %v153 = vunpack.c.h.b16 %v47
  %v154 = vunpack.c.l.b16 %v48
  %v155 = vunpack.c.h.b16 %v48
  %v156 = vunpack.c.l.b16 %v49
  %v157 = vunpack.c.h.b16 %v49
  %v158 = vunpack.c.l.b16 %v50
  %v159 = vunpack.c.h.b16 %v50
  %v160 = vunpack.c.l.b16 %v51
  %v161 = vunpack.c.h.b16 %v51
  %v162 = vunpack.c.l.b16 %v52
  %v163 = vunpack.c.h.b16 %v52
  %v164 = vunpack.c.l.b16 %v53
  %v165 = vunpack.c.h.b16 %v53
  %v166 = vunpack.c.l.b16 %v54
  %v167 = vunpack.c.h.b16 %v54
  %v168 = vunpack.c.l.b16 %v55
  %v169 = vunpack.c.h.b16 %v55
  %v170 = vunpack.c.l.b16 %v56
  %v171 = vunpack.c.h.b16 %v56
  %v172 = vunpack.c.l.b16 %v57
  %v173 = vunpack.c.h.b16 %v57
  %v174 = vunpack.c.l.b16 %v58
  %v175 = vunpack.c.h.b16 %v58
  %v176 = vpack.c.b16 %v108, %v104
  %v177 = vpack.c.b16 %v109, %v105
  %v178 = vpack.c.b16 %v110, %v106
  %v179 = vpack.c.b16 %v111, %v107
  %v180 = vpack.c.b16 %v116, %v112
  %v181 = vpack.c.b16 %v117, %v113
  %v182 = vpack.c.b16 %v118, %v114
  %v183 = vpack.c.b16 %v119, %v115
  %v184 = vpack.c.b16 %v124, %v120
  %v185 = vpack.c.b16 %v125, %v121
  %v186 = vpack.c.b16 %v126, %v122
  %v187 = vpack.c.b16 %v127, %v123
  %v188 = vpack.c.b16 %v132, %v128
  %v189 = vpack.c.b16 %v133, %v129
  %v190 = vpack.c.b16 %v134, %v130
  %v191 = vpack.c.b16 %v135, %v131
  %v192 = vpack.c.b16 %v140, %v136
  %v193 = vpack.c.b16 %v141, %v137
  %v194 = vpack.c.b16 %v142, %v138
  %v195 = vpack.c.b16 %v143, %v139
  %v196 = vpack.c.b16 %v148, %v144
  %v197 = vpack.c.b16 %v149, %v145
  %v198 = vpack.c.b16 %v150, %v146
  %v199 = vpack.c.b16 %v151, %v147
  %v200 = vpack.c.b16 %v156, %v152
  %v201 = vpack.c.b16 %v157, %v153
  %v202 = vpack.c.b16 %v158, %v154
  %v203 = vpack.c.b16 %v159, %v155
  %v204 = vpack.c.b16 %v164, %v160
  %v205 = vpack.c.b16 %v165, %v161
  %v206 = vpack.c.b16 %v166, %v162
  %v207 = vpack.c.b16 %v167, %v163
  %v208 = vpack.c.b16 %v172, %v168
  %v209 = vpack.c.b16 %v173, %v169
  %v210 = vpack.c.b16 %v174, %v170
  %v211 = vpack.c.b16 %v175, %v171
  %vm248 = vcmask 130048
  %v250 = vsel %vm248, %v66, 0
  %252 = vmatprep.subr.bf16.mxu0 %v205
  %253 = vmatpush1.bf16.msra.mxu0 %v204
  %254 = vmatprep.subr.bf16.mxu0 %v201
  %255 = vmatpush1.bf16.msra.mxu0 %v200
  %256 = vmatprep.subr.bf16.mxu0 %v197
  %257 = vmatpush1.bf16.msra.mxu0 %v196
  %258 = vmatprep.subr.bf16.mxu0 %v193
  %259 = vmatpush1.bf16.msra.mxu0 %v192
  %260 = vmatprep.subr.bf16.mxu0 %v189
  %261 = vmatpush1.bf16.msra.mxu0 %v188
  %262 = vmatprep.subr.bf16.mxu0 %v185
  %263 = vmatpush1.bf16.msra.mxu0 %v184
  %264 = vmatprep.subr.bf16.mxu0 %v181
  %265 = vmatpush1.bf16.msra.mxu0 %v180
  %266 = vmatprep.subr.bf16.mxu0 %v177
  %267 = vmatpush1.bf16.msra.mxu0 %v176
  %268 = vmatprep.subr.bf16.mxu0 0
  %269 = vmatpush2.bf16.msra.mxu0 0
  %270 = vmatprep.subr.bf16.mxu0 0
  %271 = vmatpush2.bf16.msra.mxu0 0
  %272 = vmatprep.subr.bf16.mxu0 0
  %273 = vmatpush2.bf16.msra.mxu0 0
  %274 = vmatprep.subr.bf16.mxu0 0
  %275 = vmatpush2.bf16.msra.mxu0 0
  %276 = vmatprep.subr.bf16.mxu0 0
  %277 = vmatpush2.bf16.msra.mxu0 0
  %278 = vmatprep.subr.bf16.mxu0 0
  %279 = vmatpush2.bf16.msra.mxu0 0
  %280 = vmatprep.subr.bf16.mxu0 0
  %281 = vmatpush2.bf16.msra.mxu0 0
  %282 = vmatprep.subr.bf16.mxu0 %v209
  %283 = vmatpush2.bf16.msra.mxu0 %v208
  %284 = vmatprep.mubr.bf16.mxu0 %v250
  %285 = vmatmul.mubr.bf16.gmra.mxu0 %v65
  %v286 = vpop.f32.mrf.mxu0
  %v287 = vadd.f32 0.0, %v286
  %v288 = vpop.f32.mrf.mxu0
  %v289 = vadd.f32 0.0, %v288
  %v290 = vpop.f32.mrf.mxu0
  %v291 = vadd.f32 0.0, %v290
  %v292 = vpop.f32.mrf.mxu0
  %v293 = vadd.f32 0.0, %v292
  %294 = vdwg.mxu0
  %295 = vmatprep.subr.bf16.mxu0 %v207
  %296 = vmatpush1.bf16.msra.mxu0 %v206
  %297 = vmatprep.subr.bf16.mxu0 %v203
  %298 = vmatpush1.bf16.msra.mxu0 %v202
  %299 = vmatprep.subr.bf16.mxu0 %v199
  %300 = vmatpush1.bf16.msra.mxu0 %v198
  %301 = vmatprep.subr.bf16.mxu0 %v195
  %302 = vmatpush1.bf16.msra.mxu0 %v194
  %303 = vmatprep.subr.bf16.mxu0 %v191
  %304 = vmatpush1.bf16.msra.mxu0 %v190
  %305 = vmatprep.subr.bf16.mxu0 %v187
  %306 = vmatpush1.bf16.msra.mxu0 %v186
  %307 = vmatprep.subr.bf16.mxu0 %v183
  %308 = vmatpush1.bf16.msra.mxu0 %v182
  %309 = vmatprep.subr.bf16.mxu0 %v179
  %310 = vmatpush1.bf16.msra.mxu0 %v178
  %311 = vmatprep.subr.bf16.mxu0 0
  %312 = vmatpush2.bf16.msra.mxu0 0
  %313 = vmatprep.subr.bf16.mxu0 0
  %314 = vmatpush2.bf16.msra.mxu0 0
  %315 = vmatprep.subr.bf16.mxu0 0
  %316 = vmatpush2.bf16.msra.mxu0 0
  %317 = vmatprep.subr.bf16.mxu0 0
  %318 = vmatpush2.bf16.msra.mxu0 0
  %319 = vmatprep.subr.bf16.mxu0 0
  %320 = vmatpush2.bf16.msra.mxu0 0
  %321 = vmatprep.subr.bf16.mxu0 0
  %322 = vmatpush2.bf16.msra.mxu0 0
  %323 = vmatprep.subr.bf16.mxu0 0
  %324 = vmatpush2.bf16.msra.mxu0 0
  %325 = vmatprep.subr.bf16.mxu0 %v211
  %326 = vmatpush2.bf16.msra.mxu0 %v210
  %327 = vmatprep.mubr.bf16.mxu0 %v250
  %328 = vmatmul.mubr.bf16.gmra.mxu0 %v65
  %v329 = vpop.f32.mrf.mxu0
  %v330 = vadd.f32 0.0, %v329
  %v331 = vpop.f32.mrf.mxu0
  %v332 = vadd.f32 0.0, %v331
  %v333 = vpop.f32.mrf.mxu0
  %v334 = vadd.f32 0.0, %v333
  %v335 = vpop.f32.mrf.mxu0
  %v336 = vadd.f32 0.0, %v335
  %337 = vdwg.mxu0
  %v338 = vadd.f32 %v287, %v289
  %v339 = vadd.f32 %v338, %v330
  %v340 = vadd.f32 %v339, %v332
  %341 = vadd.xlane.f32.xlu0 %v340
  %v342 = vpop.xlane.xlu0 %341
  %v343 = vadd.f32 %v291, %v293
  %v344 = vadd.f32 %v343, %v334
  %v345 = vadd.f32 %v344, %v336
  %346 = vadd.xlane.f32.xlu0 %v345
  %v347 = vpop.xlane.xlu0 %346
  %v348 = vrcp.pop 512.0
  %v349 = vmul.f32 %v342, %v348
  %v350 = vmul.f32 %v347, %v348
  %v351 = vmul.f32 %v287, %v287
  %v352 = vmul.f32 %v289, %v289
  %v353 = vmul.f32 %v330, %v330
  %v354 = vmul.f32 %v332, %v332
  %v355 = vmul.f32 %v291, %v291
  %v356 = vmul.f32 %v293, %v293
  %v357 = vmul.f32 %v334, %v334
  %v358 = vmul.f32 %v336, %v336
  %v359 = vadd.f32 %v351, %v352
  %v360 = vadd.f32 %v359, %v353
  %v361 = vadd.f32 %v360, %v354
  %362 = vadd.xlane.f32.xlu0 %v361
  %v363 = vpop.xlane.xlu0 %362
  %v364 = vadd.f32 %v355, %v356
  %v365 = vadd.f32 %v364, %v357
  %v366 = vadd.f32 %v365, %v358
  %367 = vadd.xlane.f32.xlu0 %v366
  %v368 = vpop.xlane.xlu0 %367
  %v369 = vmul.f32 %v363, %v348
  %v370 = vmul.f32 %v368, %v348
  %v371 = vmul.f32 %v349, %v349
  %v372 = vmul.f32 %v350, %v350
  %v373 = vsub.f32 %v369, %v371
  %v374 = vsub.f32 %v370, %v372
  %v375 = vsub.f32 %v287, %v349
  %v376 = vsub.f32 %v289, %v349
  %v377 = vsub.f32 %v330, %v349
  %v378 = vsub.f32 %v332, %v349
  %v379 = vsub.f32 %v291, %v350
  %v380 = vsub.f32 %v293, %v350
  %v381 = vsub.f32 %v334, %v350
  %v382 = vsub.f32 %v336, %v350
  %v383 = vadd.f32 %v373, 1e-05
  %v384 = vadd.f32 %v374, 1e-05
  %v385 = vrsqrt.pop %v383
  %v386 = vrsqrt.pop %v384
  %v387 = vmul.f32 %v375, %v385
  %v388 = vmul.f32 %v376, %v385
  %v389 = vmul.f32 %v377, %v385
  %v390 = vmul.f32 %v378, %v385
  %v391 = vmul.f32 %v379, %v386
  %v392 = vmul.f32 %v380, %v386
  %v393 = vmul.f32 %v381, %v386
  %v394 = vmul.f32 %v382, %v386
  %v395 = vld [vmem:[%s2] sm:$0xff]
  %v396 = vld [vmem:[%s2 + $0x8] sm:$0xff]
  %398 = vset.pattern.permute.xlu0 0
  %399 = vperm.xlu0 %398, %v395
  %v400 = vpop.permute.xlu0 %399
  %403 = vset.pattern.permute.xlu0 0
  %404 = vperm.xlu0 %403, %v396
  %v405 = vpop.permute.xlu0 %404
  %v407 = vmul.f32 %v387, %v400
  %v408 = vmul.f32 %v388, %v400
  %v409 = vmul.f32 %v389, %v400
  %v410 = vmul.f32 %v390, %v400
  %v411 = vmul.f32 %v391, %v405
  %v412 = vmul.f32 %v392, %v405
  %v413 = vmul.f32 %v393, %v405
  %v414 = vmul.f32 %v394, %v405
  %v415 = vld [vmem:[%s3] sm:$0xff]
  %v416 = vld [vmem:[%s3 + $0x8] sm:$0xff]
  %418 = vset.pattern.permute.xlu0 0
  %419 = vperm.xlu0 %418, %v415
  %v420 = vpop.permute.xlu0 %419
  %423 = vset.pattern.permute.xlu0 0
  %424 = vperm.xlu0 %423, %v416
  %v425 = vpop.permute.xlu0 %424
  %v427 = vadd.f32 %v407, %v420
  %v428 = vadd.f32 %v408, %v420
  %v429 = vadd.f32 %v409, %v420
  %v430 = vadd.f32 %v410, %v420
  %v431 = vadd.f32 %v411, %v425
  %v432 = vadd.f32 %v412, %v425
  %v433 = vadd.f32 %v413, %v425
  %v434 = vadd.f32 %v414, %v425
  %435 = vst [vmem:[%s5] sm:$0xff] %v427
  %436 = vst [vmem:[%s5 + $0x8] sm:$0xff] %v428
  %437 = vst [vmem:[%s5 + $0x10] sm:$0xff] %v429
  %438 = vst [vmem:[%s5 + $0x18] sm:$0xff] %v430
  %439 = vst [vmem:[%s5 + $0x20] sm:$0xff] %v431
  %440 = vst [vmem:[%s5 + $0x28] sm:$0xff] %v432
  %441 = vst [vmem:[%s5 + $0x30] sm:$0xff] %v433
  %442 = vst [vmem:[%s5 + $0x38] sm:$0xff] %v434
  %v443 = vld [vmem:[%s4] sm:$0xff]
  %v444 = vld [vmem:[%s4 + $0x8] sm:$0xff]
  %v445 = vld [vmem:[%s4 + $0x10] sm:$0xff]
  %v446 = vld [vmem:[%s4 + $0x18] sm:$0xff]
  %v447 = vld [vmem:[%s4 + $0x20] sm:$0xff]
  %v448 = vld [vmem:[%s4 + $0x28] sm:$0xff]
  %v449 = vld [vmem:[%s4 + $0x30] sm:$0xff]
  %v450 = vld [vmem:[%s4 + $0x38] sm:$0xff]
  %451 = vst [vmem:[%s5 + $0x40] sm:$0xff] %v443
  %452 = vst [vmem:[%s5 + $0x48] sm:$0xff] %v444
  %453 = vst [vmem:[%s5 + $0x50] sm:$0xff] %v445
  %454 = vst [vmem:[%s5 + $0x58] sm:$0xff] %v446
  %455 = vst [vmem:[%s5 + $0x60] sm:$0xff] %v447
  %456 = vst [vmem:[%s5 + $0x68] sm:$0xff] %v448
  %457 = vst [vmem:[%s5 + $0x70] sm:$0xff] %v449
  %458 = vst [vmem:[%s5 + $0x78] sm:$0xff] %v450
  // Predicated region
  $region22: #{a_call__.5} parent=0 // pred_check
    _
  $region23: #{a_call__.5} parent=0 // pred_check_branch
    %460 = sbr.rel (0) target = $region25
  $region24: #{a_call__.5} parent=0 // pred_region
    _
  $region25: #{a_call__.5} parent=0 // pred_fallthru
    _
  // Predicated region
  $region26: #{a_call__.5} parent=0 // pred_check
    _
  $region27: #{a_call__.5} parent=0 // pred_check_branch
    %462 = sbr.rel (0) target = $region29
  $region28: #{a_call__.5} parent=0 // pred_region
    _
  $region29: #{a_call__.5} parent=0 // pred_fallthru
    _

</llo_original>
